<compile_context>
chip_gen: v7x
topology: tpu7x:2x2x1
jax: 0.10.0
libtpu: 0.0.40
codegen_flags: <defaults>
</compile_context>

<pallas_src>
import functools

import jax
import jax.numpy as jnp
from jax.experimental import pallas as pl
from jax.experimental.pallas import tpu as pltpu


def _fused_block_kernel(heads,
                        vh_ref, kh_ref, qh_ref, qres_ref, gm_ref, fm_ref,
                        wv_ref, wk_ref, wq_ref, wo_ref, bo_ref,
                        g1_ref, b1_ref, g2_ref, b2_ref,
                        w1_ref, bb1_ref, w2_ref, bb2_ref,
                        o_ref):
    HL, D = vh_ref.shape[1], vh_ref.shape[2]
    L = HL // heads
    E = heads * D
    eps = jnp.float32(1e-5)

    # ---- multi-head attention -------------------------------------------------
    v2 = vh_ref[0]          # (H*L, D) rows grouped head-major
    k2 = kh_ref[0]
    q2 = qh_ref[0]

    # per-head linear projections as single 2-D matmuls (weights pre-transposed)
    vp = jnp.dot(v2, wv_ref[...], preferred_element_type=jnp.float32).reshape(heads, L, D)
    kp = jnp.dot(k2, wk_ref[...], preferred_element_type=jnp.float32).reshape(heads, L, D)
    qp = jnp.dot(q2, wq_ref[...], preferred_element_type=jnp.float32).reshape(heads, L, D)

    # all-head scores in one batched contraction
    energy = jnp.einsum('hqd,hkd->hqk', qp, kp,
                        preferred_element_type=jnp.float32)       # (H, L, L)

    # graph mask (pre-scaled by 1/sqrt(E) in the wrapper) + pad masked_fill
    energy = jnp.where(fm_ref[0] > 0.0, energy * gm_ref[0], jnp.float32(-1e20))

    # softmax along keys
    m = jnp.max(energy, axis=-1, keepdims=True)
    p = jnp.exp(energy - m)
    attn = p * pl.reciprocal(jnp.sum(p, axis=-1, keepdims=True), approx=True)

    ctx = jnp.einsum('hqk,hkd->hqd', attn, vp,
                     preferred_element_type=jnp.float32)          # (H, L, D)

    # fc_out: head concat folded into per-head row-slices of W_o (no lane concat)
    attn_out = jnp.zeros((L, E), jnp.float32)
    for h in range(heads):
        attn_out = attn_out + jnp.dot(ctx[h], wo_ref[h],
                                      preferred_element_type=jnp.float32)
    attn_out = attn_out + bo_ref[...]

    # ---- residual + LayerNorm1 (dropout is identity in eval mode) --------------
    # TODO(synk): nn.Dropout is identity in eval mode; no stochastic dropout applied.
    x_in = attn_out + qres_ref[0]
    mu = jnp.mean(x_in, axis=-1, keepdims=True)
    var = jnp.mean(jnp.square(x_in - mu), axis=-1, keepdims=True)
    x = (x_in - mu) * jax.lax.rsqrt(var + eps) * g1_ref[...] + b1_ref[...]

    # ---- feed-forward: Linear -> ReLU -> Linear ---------------------------------
    h1 = jnp.dot(x, w1_ref[...], preferred_element_type=jnp.float32) + bb1_ref[...]
    h1 = jnp.maximum(h1, 0.0)
    ff = jnp.dot(h1, w2_ref[...], preferred_element_type=jnp.float32) + bb2_ref[...]

    # ---- residual + LayerNorm2 --------------------------------------------------
    y = ff + x
    mu2 = jnp.mean(y, axis=-1, keepdims=True)
    var2 = jnp.mean(jnp.square(y - mu2), axis=-1, keepdims=True)
    o_ref[0] = (y - mu2) * jax.lax.rsqrt(var2 + eps) * g2_ref[...] + b2_ref[...]


def transformer_block(value, key, query, pad_mask, graph_mask, params, heads):
    N, L, E = query.shape
    D = E // heads

    def to_heads(x):
        # (N, L, E) -> (N, H*L, D), rows grouped head-major (wrapper-side layout plumbing)
        return x.reshape(N, L, heads, D).transpose(0, 2, 1, 3).reshape(N, heads * L, D)

    value = value.astype(jnp.float32)
    key = key.astype(jnp.float32)
    query = query.astype(jnp.float32)

    v_h = to_heads(value)
    k_h = to_heads(key)
    q_h = to_heads(query)

    # mask precompute (fused by XLA outside the kernel)
    pm_f = jnp.where(pad_mask, 1.0, 0.0).astype(jnp.float32)                # (N, L)
    fm = pm_f[:, :, None] * pm_f[:, None, :]                                # (N, L, L)
    gm_scaled = graph_mask.astype(jnp.float32) / jnp.sqrt(jnp.float32(E))   # fold 1/sqrt(E)

    # pre-transposed weights (no in-kernel transposes)
    wvT = params['wv'].T                       # (D, D)
    wkT = params['wk'].T
    wqT = params['wq'].T
    woT_h = params['wo'].T.reshape(heads, D, E)  # per-head row blocks of fc_out weight
    w1T = params['w1'].T                       # (E, F)
    w2T = params['w2'].T                       # (F, E)

    head_spec = pl.BlockSpec((1, heads * L, D), lambda b: (b, 0, 0))
    seq_spec = pl.BlockSpec((1, L, E), lambda b: (b, 0, 0))
    mask_spec = pl.BlockSpec((1, L, L), lambda b: (b, 0, 0))

    def full(arr):
        nd = arr.ndim
        return pl.BlockSpec(arr.shape, lambda b: (0,) * nd)

    out = pl.pallas_call(
        functools.partial(_fused_block_kernel, heads),
        out_shape=jax.ShapeDtypeStruct((N, L, E), jnp.float32),
        grid=(N,),
        in_specs=[head_spec, head_spec, head_spec, seq_spec, mask_spec, mask_spec,
                  full(wvT), full(wkT), full(wqT), full(woT_h), full(params['bo']),
                  full(params['g1']), full(params['b1']),
                  full(params['g2']), full(params['b2']),
                  full(w1T), full(params['bb1']),
                  full(w2T), full(params['bb2'])],
        out_specs=seq_spec,
        compiler_params=pltpu.CompilerParams(dimension_semantics=("parallel",)),
    )(v_h, k_h, q_h, query, gm_scaled, fm,
      wvT, wkT, wqT, woT_h, params['bo'],
      params['g1'], params['b1'], params['g2'], params['b2'],
      w1T, params['bb1'], w2T, params['bb2'])
    return out


def reference(value, key, query, pad_mask, graph_mask, params, heads):
    """Pure-JAX reference mirroring the PyTorch forward, for correctness check."""
    N, L, E = query.shape
    D = E // heads

    def split(x):
        return x.reshape(N, L, heads, D)

    v = split(value) @ params['wv'].T
    k = split(key) @ params['wk'].T
    q = split(query) @ params['wq'].T
    energy = jnp.einsum('nqhd,nkhd->nhqk', q, k)
    energy = energy * graph_mask.reshape(N, 1, L, L)
    pm = jnp.where(pad_mask, 1.0, 0.0)[..., None]                     # (N, L, 1)
    fm = jnp.einsum('nqa,nka->nqk', pm, pm)[:, None]                  # (N, 1, L, L)
    energy = jnp.where(fm == 0.0, -1e20, energy)
    attn = jax.nn.softmax(energy / jnp.sqrt(jnp.float32(E)), axis=3)
    out = jnp.einsum('nhql,nlhd->nqhd', attn, v).reshape(N, L, E)
    attn_out = out @ params['wo'].T + params['bo'][0]

    def ln(x, g, b):
        mu = x.mean(-1, keepdims=True)
        var = ((x - mu) ** 2).mean(-1, keepdims=True)
        return (x - mu) / jnp.sqrt(var + 1e-5) * g[0] + b[0]

    x = ln(attn_out + query, params['g1'], params['b1'])
    h = jnp.maximum(x @ params['w1'].T + params['bb1'][0], 0.0)
    ff = h @ params['w2'].T + params['bb2'][0]
    return ln(ff + x, params['g2'], params['b2'])


def make_params(key, embed_size, heads, forward_expansion):
    D = embed_size // heads
    F = forward_expansion * embed_size
    ks = jax.random.split(key, 8)
    p = {
        'wv': jax.random.normal(ks[0], (D, D), jnp.float32) * 0.2,
        'wk': jax.random.normal(ks[1], (D, D), jnp.float32) * 0.2,
        'wq': jax.random.normal(ks[2], (D, D), jnp.float32) * 0.2,
        'wo': jax.random.normal(ks[3], (embed_size, embed_size), jnp.float32) * 0.1,
        'bo': jax.random.normal(ks[4], (1, embed_size), jnp.float32) * 0.1,
        'w1': jax.random.normal(ks[5], (F, embed_size), jnp.float32) * 0.1,
        'bb1': jax.random.normal(ks[6], (1, F), jnp.float32) * 0.1,
        'w2': jax.random.normal(ks[7], (embed_size, F), jnp.float32) * 0.1,
        'bb2': jnp.zeros((1, embed_size), jnp.float32),
        # nn.LayerNorm defaults: weight=1, bias=0
        'g1': jnp.ones((1, embed_size), jnp.float32),
        'b1': jnp.zeros((1, embed_size), jnp.float32),
        'g2': jnp.ones((1, embed_size), jnp.float32),
        'b2': jnp.zeros((1, embed_size), jnp.float32),
    }
    return p


if __name__ == "__main__":
    N, L, E, H, FE = 2, 8, 32, 4, 4

    root = jax.random.PRNGKey(0)
    k_in, k_p, k_g = jax.random.split(root, 3)
    kv, kk, kq = jax.random.split(k_in, 3)

    value = jax.random.normal(kv, (N, L, E), jnp.float32)
    key_t = jax.random.normal(kk, (N, L, E), jnp.float32)
    query = jax.random.normal(kq, (N, L, E), jnp.float32)

    # pad mask: batch 0 fully valid, batch 1 has last 2 positions padded
    pad_mask = jnp.array([[True] * L,
                          [True] * (L - 2) + [False] * 2], dtype=jnp.bool_)
    # graph mask: deterministic 0/1 connectivity mask
    graph_mask = (jax.random.uniform(k_g, (N, L, L)) > 0.3).astype(jnp.float32)

    params = make_params(k_p, E, H, FE)

    out = transformer_block(value, key_t, query, pad_mask, graph_mask, params, H)
    out = jax.block_until_ready(out)

    ref = reference(value, key_t, query, pad_mask, graph_mask, params, H)
    assert out.shape == (N, L, E)
    assert jnp.allclose(out, ref, atol=2e-3, rtol=2e-3), \
        f"max abs err {jnp.max(jnp.abs(out - ref))}"

    print("KERNEL_OK")
</pallas_src>

<mosaic_0001>
module attributes {stable_mosaic.version = 11 : i64} {
  func.func @_fused_block_kernel(%arg0: i32, %arg1: memref<1x32x8xf32, #tpu.memory_space<vmem>>, %arg2: memref<1x32x8xf32, #tpu.memory_space<vmem>>, %arg3: memref<1x32x8xf32, #tpu.memory_space<vmem>>, %arg4: memref<1x8x32xf32, #tpu.memory_space<vmem>>, %arg5: memref<1x8x8xf32, #tpu.memory_space<vmem>>, %arg6: memref<1x8x8xf32, #tpu.memory_space<vmem>>, %arg7: memref<8x8xf32, #tpu.memory_space<vmem>>, %arg8: memref<8x8xf32, #tpu.memory_space<vmem>>, %arg9: memref<8x8xf32, #tpu.memory_space<vmem>>, %arg10: memref<4x8x32xf32, #tpu.memory_space<vmem>>, %arg11: memref<1x32xf32, #tpu.memory_space<vmem>>, %arg12: memref<1x32xf32, #tpu.memory_space<vmem>>, %arg13: memref<1x32xf32, #tpu.memory_space<vmem>>, %arg14: memref<1x32xf32, #tpu.memory_space<vmem>>, %arg15: memref<1x32xf32, #tpu.memory_space<vmem>>, %arg16: memref<32x128xf32, #tpu.memory_space<vmem>>, %arg17: memref<1x128xf32, #tpu.memory_space<vmem>>, %arg18: memref<128x32xf32, #tpu.memory_space<vmem>>, %arg19: memref<1x32xf32, #tpu.memory_space<vmem>>, %arg20: memref<1x8x32xf32, #tpu.memory_space<vmem>>) attributes {dimension_semantics = [#tpu.dimension_semantics<parallel>], iteration_bounds = array<i64: 2>, scalar_prefetch = 0 : i64, scratch_operands = 0 : i64, tpu.core_type = #tpu.core_type<tc>, window_params = [{transform_indices = @transform_0, window_bounds = array<i64: 1, 32, 8>}, {transform_indices = @transform_1, window_bounds = array<i64: 1, 32, 8>}, {transform_indices = @transform_2, window_bounds = array<i64: 1, 32, 8>}, {transform_indices = @transform_3, window_bounds = array<i64: 1, 8, 32>}, {transform_indices = @transform_4, window_bounds = array<i64: 1, 8, 8>}, {transform_indices = @transform_5, window_bounds = array<i64: 1, 8, 8>}, {pipeline_mode = #tpu.pipeline_mode<synchronous>, transform_indices = @transform_6, window_bounds = array<i64: 8, 8>}, {pipeline_mode = #tpu.pipeline_mode<synchronous>, transform_indices = @transform_7, window_bounds = array<i64: 8, 8>}, {pipeline_mode = #tpu.pipeline_mode<synchronous>, transform_indices = @transform_8, window_bounds = array<i64: 8, 8>}, {pipeline_mode = #tpu.pipeline_mode<synchronous>, transform_indices = @transform_9, window_bounds = array<i64: 4, 8, 32>}, {pipeline_mode = #tpu.pipeline_mode<synchronous>, transform_indices = @transform_10, window_bounds = array<i64: 1, 32>}, {pipeline_mode = #tpu.pipeline_mode<synchronous>, transform_indices = @transform_11, window_bounds = array<i64: 1, 32>}, {pipeline_mode = #tpu.pipeline_mode<synchronous>, transform_indices = @transform_12, window_bounds = array<i64: 1, 32>}, {pipeline_mode = #tpu.pipeline_mode<synchronous>, transform_indices = @transform_13, window_bounds = array<i64: 1, 32>}, {pipeline_mode = #tpu.pipeline_mode<synchronous>, transform_indices = @transform_14, window_bounds = array<i64: 1, 32>}, {pipeline_mode = #tpu.pipeline_mode<synchronous>, transform_indices = @transform_15, window_bounds = array<i64: 32, 128>}, {pipeline_mode = #tpu.pipeline_mode<synchronous>, transform_indices = @transform_16, window_bounds = array<i64: 1, 128>}, {pipeline_mode = #tpu.pipeline_mode<synchronous>, transform_indices = @transform_17, window_bounds = array<i64: 128, 32>}, {pipeline_mode = #tpu.pipeline_mode<synchronous>, transform_indices = @transform_18, window_bounds = array<i64: 1, 32>}, {transform_indices = @transform_19, window_bounds = array<i64: 1, 8, 32>}]} {
    %c0 = arith.constant 0 : index
    %c0_0 = arith.constant 0 : index
    %c0_1 = arith.constant 0 : index
    %0 = vector.load %arg1[%c0, %c0_0, %c0_1] : memref<1x32x8xf32, #tpu.memory_space<vmem>>, vector<1x32x8xf32>
    %1 = vector.shape_cast %0 : vector<1x32x8xf32> to vector<32x8xf32>
    %c0_2 = arith.constant 0 : index
    %c0_3 = arith.constant 0 : index
    %c0_4 = arith.constant 0 : index
    %2 = vector.load %arg2[%c0_2, %c0_3, %c0_4] : memref<1x32x8xf32, #tpu.memory_space<vmem>>, vector<1x32x8xf32>
    %3 = vector.shape_cast %2 : vector<1x32x8xf32> to vector<32x8xf32>
    %c0_5 = arith.constant 0 : index
    %c0_6 = arith.constant 0 : index
    %c0_7 = arith.constant 0 : index
    %4 = vector.load %arg3[%c0_5, %c0_6, %c0_7] : memref<1x32x8xf32, #tpu.memory_space<vmem>>, vector<1x32x8xf32>
    %5 = vector.shape_cast %4 : vector<1x32x8xf32> to vector<32x8xf32>
    %c0_8 = arith.constant 0 : index
    %c0_9 = arith.constant 0 : index
    %6 = vector.load %arg7[%c0_8, %c0_9] : memref<8x8xf32, #tpu.memory_space<vmem>>, vector<8x8xf32>
    %cst = arith.constant dense<0.000000e+00> : vector<32x8xf32>
    %7 = tpu.matmul %1, %6, %cst {dimension_numbers = #tpu.dot_dimension_numbers<[1], [0], [0], [1], [0, 0, 1, 1], [], []>} : vector<32x8xf32>, vector<8x8xf32>, vector<32x8xf32> -> vector<32x8xf32>
    %8 = vector.shape_cast %7 : vector<32x8xf32> to vector<4x8x8xf32>
    %c0_10 = arith.constant 0 : index
    %c0_11 = arith.constant 0 : index
    %9 = vector.load %arg8[%c0_10, %c0_11] : memref<8x8xf32, #tpu.memory_space<vmem>>, vector<8x8xf32>
    %cst_12 = arith.constant dense<0.000000e+00> : vector<32x8xf32>
    %10 = tpu.matmul %3, %9, %cst_12 {dimension_numbers = #tpu.dot_dimension_numbers<[1], [0], [0], [1], [0, 0, 1, 1], [], []>} : vector<32x8xf32>, vector<8x8xf32>, vector<32x8xf32> -> vector<32x8xf32>
    %11 = vector.shape_cast %10 : vector<32x8xf32> to vector<4x8x8xf32>
    %c0_13 = arith.constant 0 : index
    %c0_14 = arith.constant 0 : index
    %12 = vector.load %arg9[%c0_13, %c0_14] : memref<8x8xf32, #tpu.memory_space<vmem>>, vector<8x8xf32>
    %cst_15 = arith.constant dense<0.000000e+00> : vector<32x8xf32>
    %13 = tpu.matmul %5, %12, %cst_15 {dimension_numbers = #tpu.dot_dimension_numbers<[1], [0], [0], [1], [0, 0, 1, 1], [], []>} : vector<32x8xf32>, vector<8x8xf32>, vector<32x8xf32> -> vector<32x8xf32>
    %14 = vector.shape_cast %13 : vector<32x8xf32> to vector<4x8x8xf32>
    "tpu.trace_start"() <{level = 10 : i32, message = "hqd,hkd->hqk"}> : () -> ()
    %cst_16 = arith.constant dense<0.000000e+00> : vector<4x8x8xf32>
    %15 = tpu.matmul %14, %11, %cst_16 {dimension_numbers = #tpu.dot_dimension_numbers<[2], [2], [1], [1], [0, 0, 0, 1, 1, 1], [0], [0]>} : vector<4x8x8xf32>, vector<4x8x8xf32>, vector<4x8x8xf32> -> vector<4x8x8xf32>
    "tpu.trace_stop"() : () -> ()
    %c0_17 = arith.constant 0 : index
    %c0_18 = arith.constant 0 : index
    %c0_19 = arith.constant 0 : index
    %16 = vector.load %arg6[%c0_17, %c0_18, %c0_19] : memref<1x8x8xf32, #tpu.memory_space<vmem>>, vector<1x8x8xf32>
    %17 = vector.shape_cast %16 : vector<1x8x8xf32> to vector<8x8xf32>
    %cst_20 = arith.constant 0.000000e+00 : f32
    %18 = vector.broadcast %cst_20 : f32 to vector<8x8xf32>
    %19 = arith.cmpf ogt, %17, %18 : vector<8x8xf32>
    %c0_21 = arith.constant 0 : index
    %c0_22 = arith.constant 0 : index
    %c0_23 = arith.constant 0 : index
    %20 = vector.load %arg5[%c0_21, %c0_22, %c0_23] : memref<1x8x8xf32, #tpu.memory_space<vmem>>, vector<1x8x8xf32>
    %21 = vector.shape_cast %20 : vector<1x8x8xf32> to vector<8x8xf32>
    %22 = vector.shape_cast %21 : vector<8x8xf32> to vector<1x8x8xf32>
    %23 = vector.broadcast %22 : vector<1x8x8xf32> to vector<4x8x8xf32>
    %24 = arith.mulf %15, %23 : vector<4x8x8xf32>
    %cst_24 = arith.constant -1.000000e+20 : f32
    %25 = vector.shape_cast %19 : vector<8x8xi1> to vector<1x8x8xi1>
    %26 = vector.broadcast %25 : vector<1x8x8xi1> to vector<4x8x8xi1>
    %27 = vector.broadcast %cst_24 : f32 to vector<4x8x8xf32>
    %28 = arith.select %26, %24, %27 : vector<4x8x8xi1>, vector<4x8x8xf32>
    %cst_25 = arith.constant dense<0xFF800000> : vector<4x8xf32>
    %29 = vector.multi_reduction <maximumf>, %28, %cst_25 [2] : vector<4x8x8xf32> to vector<4x8xf32>
    %30 = vector.shape_cast %29 : vector<4x8xf32> to vector<4x8x1xf32>
    %31 = vector.broadcast %30 : vector<4x8x1xf32> to vector<4x8x8xf32>
    %32 = arith.subf %28, %31 : vector<4x8x8xf32>
    %33 = math.exp %32 : vector<4x8x8xf32>
    %cst_26 = arith.constant dense<0.000000e+00> : vector<4x8xf32>
    %34 = vector.multi_reduction <add>, %33, %cst_26 [2] : vector<4x8x8xf32> to vector<4x8xf32>
    %35 = vector.shape_cast %34 : vector<4x8xf32> to vector<4x8x1xf32>
    %36 = tpu.reciprocal %35 {approx = true} : vector<4x8x1xf32> -> vector<4x8x1xf32>
    %37 = vector.broadcast %36 : vector<4x8x1xf32> to vector<4x8x8xf32>
    %38 = arith.mulf %33, %37 : vector<4x8x8xf32>
    "tpu.trace_start"() <{level = 10 : i32, message = "hqk,hkd->hqd"}> : () -> ()
    %cst_27 = arith.constant dense<0.000000e+00> : vector<4x8x8xf32>
    %39 = tpu.matmul %38, %8, %cst_27 {dimension_numbers = #tpu.dot_dimension_numbers<[2], [1], [1], [2], [0, 0, 0, 1, 1, 2], [0], [0]>} : vector<4x8x8xf32>, vector<4x8x8xf32>, vector<4x8x8xf32> -> vector<4x8x8xf32>
    %cst_28 = arith.constant 0.000000e+00 : f32
    "tpu.trace_stop"() : () -> ()
    %40 = vector.broadcast %cst_28 : f32 to vector<8x32xf32>
    %41 = vector.extract_strided_slice %39 {offsets = [0, 0, 0], sizes = [1, 8, 8], strides = [1, 1, 1]} : vector<4x8x8xf32> to vector<1x8x8xf32>
    %42 = vector.shape_cast %41 : vector<1x8x8xf32> to vector<8x8xf32>
    %c0_29 = arith.constant 0 : index
    %c0_30 = arith.constant 0 : index
    %c0_31 = arith.constant 0 : index
    %43 = vector.load %arg10[%c0_29, %c0_30, %c0_31] : memref<4x8x32xf32, #tpu.memory_space<vmem>>, vector<1x8x32xf32>
    %44 = vector.shape_cast %43 : vector<1x8x32xf32> to vector<8x32xf32>
    %cst_32 = arith.constant dense<0.000000e+00> : vector<8x32xf32>
    %45 = tpu.matmul %42, %44, %cst_32 {dimension_numbers = #tpu.dot_dimension_numbers<[1], [0], [0], [1], [0, 0, 1, 1], [], []>} : vector<8x8xf32>, vector<8x32xf32>, vector<8x32xf32> -> vector<8x32xf32>
    %46 = arith.addf %40, %45 : vector<8x32xf32>
    %47 = vector.extract_strided_slice %39 {offsets = [1, 0, 0], sizes = [1, 8, 8], strides = [1, 1, 1]} : vector<4x8x8xf32> to vector<1x8x8xf32>
    %48 = vector.shape_cast %47 : vector<1x8x8xf32> to vector<8x8xf32>
    %c1 = arith.constant 1 : index
    %c0_33 = arith.constant 0 : index
    %c0_34 = arith.constant 0 : index
    %49 = vector.load %arg10[%c1, %c0_33, %c0_34] : memref<4x8x32xf32, #tpu.memory_space<vmem>>, vector<1x8x32xf32>
    %50 = vector.shape_cast %49 : vector<1x8x32xf32> to vector<8x32xf32>
    %cst_35 = arith.constant dense<0.000000e+00> : vector<8x32xf32>
    %51 = tpu.matmul %48, %50, %cst_35 {dimension_numbers = #tpu.dot_dimension_numbers<[1], [0], [0], [1], [0, 0, 1, 1], [], []>} : vector<8x8xf32>, vector<8x32xf32>, vector<8x32xf32> -> vector<8x32xf32>
    %52 = arith.addf %46, %51 : vector<8x32xf32>
    %53 = vector.extract_strided_slice %39 {offsets = [2, 0, 0], sizes = [1, 8, 8], strides = [1, 1, 1]} : vector<4x8x8xf32> to vector<1x8x8xf32>
    %54 = vector.shape_cast %53 : vector<1x8x8xf32> to vector<8x8xf32>
    %c2 = arith.constant 2 : index
    %c0_36 = arith.constant 0 : index
    %c0_37 = arith.constant 0 : index
    %55 = vector.load %arg10[%c2, %c0_36, %c0_37] : memref<4x8x32xf32, #tpu.memory_space<vmem>>, vector<1x8x32xf32>
    %56 = vector.shape_cast %55 : vector<1x8x32xf32> to vector<8x32xf32>
    %cst_38 = arith.constant dense<0.000000e+00> : vector<8x32xf32>
    %57 = tpu.matmul %54, %56, %cst_38 {dimension_numbers = #tpu.dot_dimension_numbers<[1], [0], [0], [1], [0, 0, 1, 1], [], []>} : vector<8x8xf32>, vector<8x32xf32>, vector<8x32xf32> -> vector<8x32xf32>
    %58 = arith.addf %52, %57 : vector<8x32xf32>
    %59 = vector.extract_strided_slice %39 {offsets = [3, 0, 0], sizes = [1, 8, 8], strides = [1, 1, 1]} : vector<4x8x8xf32> to vector<1x8x8xf32>
    %60 = vector.shape_cast %59 : vector<1x8x8xf32> to vector<8x8xf32>
    %c3 = arith.constant 3 : index
    %c0_39 = arith.constant 0 : index
    %c0_40 = arith.constant 0 : index
    %61 = vector.load %arg10[%c3, %c0_39, %c0_40] : memref<4x8x32xf32, #tpu.memory_space<vmem>>, vector<1x8x32xf32>
    %62 = vector.shape_cast %61 : vector<1x8x32xf32> to vector<8x32xf32>
    %cst_41 = arith.constant dense<0.000000e+00> : vector<8x32xf32>
    %63 = tpu.matmul %60, %62, %cst_41 {dimension_numbers = #tpu.dot_dimension_numbers<[1], [0], [0], [1], [0, 0, 1, 1], [], []>} : vector<8x8xf32>, vector<8x32xf32>, vector<8x32xf32> -> vector<8x32xf32>
    %64 = arith.addf %58, %63 : vector<8x32xf32>
    %c0_42 = arith.constant 0 : index
    %c0_43 = arith.constant 0 : index
    %65 = vector.load %arg11[%c0_42, %c0_43] : memref<1x32xf32, #tpu.memory_space<vmem>>, vector<1x32xf32>
    %66 = vector.broadcast %65 : vector<1x32xf32> to vector<8x32xf32>
    %67 = arith.addf %64, %66 : vector<8x32xf32>
    %c0_44 = arith.constant 0 : index
    %c0_45 = arith.constant 0 : index
    %c0_46 = arith.constant 0 : index
    %68 = vector.load %arg4[%c0_44, %c0_45, %c0_46] : memref<1x8x32xf32, #tpu.memory_space<vmem>>, vector<1x8x32xf32>
    %69 = vector.shape_cast %68 : vector<1x8x32xf32> to vector<8x32xf32>
    %70 = arith.addf %67, %69 : vector<8x32xf32>
    %cst_47 = arith.constant dense<0.000000e+00> : vector<8xf32>
    %71 = vector.multi_reduction <add>, %70, %cst_47 [1] : vector<8x32xf32> to vector<8xf32>
    %72 = vector.shape_cast %71 : vector<8xf32> to vector<8x1xf32>
    %cst_48 = arith.constant 3.200000e+01 : f32
    %73 = vector.broadcast %cst_48 : f32 to vector<8x1xf32>
    %74 = arith.divf %72, %73 : vector<8x1xf32>
    %75 = vector.broadcast %74 : vector<8x1xf32> to vector<8x32xf32>
    %76 = arith.subf %70, %75 : vector<8x32xf32>
    %77 = arith.mulf %76, %76 : vector<8x32xf32>
    %cst_49 = arith.constant dense<0.000000e+00> : vector<8xf32>
    %78 = vector.multi_reduction <add>, %77, %cst_49 [1] : vector<8x32xf32> to vector<8xf32>
    %79 = vector.shape_cast %78 : vector<8xf32> to vector<8x1xf32>
    %cst_50 = arith.constant 3.200000e+01 : f32
    %80 = vector.broadcast %cst_50 : f32 to vector<8x1xf32>
    %81 = arith.divf %79, %80 : vector<8x1xf32>
    %82 = vector.broadcast %74 : vector<8x1xf32> to vector<8x32xf32>
    %83 = arith.subf %70, %82 : vector<8x32xf32>
    %cst_51 = arith.constant 9.99999974E-6 : f32
    %84 = vector.broadcast %cst_51 : f32 to vector<8x1xf32>
    %85 = arith.addf %81, %84 : vector<8x1xf32>
    %86 = math.rsqrt %85 : vector<8x1xf32>
    %87 = vector.broadcast %86 : vector<8x1xf32> to vector<8x32xf32>
    %88 = arith.mulf %83, %87 : vector<8x32xf32>
    %c0_52 = arith.constant 0 : index
    %c0_53 = arith.constant 0 : index
    %89 = vector.load %arg12[%c0_52, %c0_53] : memref<1x32xf32, #tpu.memory_space<vmem>>, vector<1x32xf32>
    %90 = vector.broadcast %89 : vector<1x32xf32> to vector<8x32xf32>
    %91 = arith.mulf %88, %90 : vector<8x32xf32>
    %c0_54 = arith.constant 0 : index
    %c0_55 = arith.constant 0 : index
    %92 = vector.load %arg13[%c0_54, %c0_55] : memref<1x32xf32, #tpu.memory_space<vmem>>, vector<1x32xf32>
    %93 = vector.broadcast %92 : vector<1x32xf32> to vector<8x32xf32>
    %94 = arith.addf %91, %93 : vector<8x32xf32>
    %c0_56 = arith.constant 0 : index
    %c0_57 = arith.constant 0 : index
    %95 = vector.load %arg16[%c0_56, %c0_57] : memref<32x128xf32, #tpu.memory_space<vmem>>, vector<32x128xf32>
    %cst_58 = arith.constant dense<0.000000e+00> : vector<8x128xf32>
    %96 = tpu.matmul %94, %95, %cst_58 {dimension_numbers = #tpu.dot_dimension_numbers<[1], [0], [0], [1], [0, 0, 1, 1], [], []>} : vector<8x32xf32>, vector<32x128xf32>, vector<8x128xf32> -> vector<8x128xf32>
    %c0_59 = arith.constant 0 : index
    %c0_60 = arith.constant 0 : index
    %97 = vector.load %arg17[%c0_59, %c0_60] : memref<1x128xf32, #tpu.memory_space<vmem>>, vector<1x128xf32>
    %98 = vector.broadcast %97 : vector<1x128xf32> to vector<8x128xf32>
    %99 = arith.addf %96, %98 : vector<8x128xf32>
    %cst_61 = arith.constant 0.000000e+00 : f32
    %100 = vector.broadcast %cst_61 : f32 to vector<8x128xf32>
    %101 = arith.maximumf %99, %100 : vector<8x128xf32>
    %c0_62 = arith.constant 0 : index
    %c0_63 = arith.constant 0 : index
    %102 = vector.load %arg18[%c0_62, %c0_63] : memref<128x32xf32, #tpu.memory_space<vmem>>, vector<128x32xf32>
    %cst_64 = arith.constant dense<0.000000e+00> : vector<8x32xf32>
    %103 = tpu.matmul %101, %102, %cst_64 {dimension_numbers = #tpu.dot_dimension_numbers<[1], [0], [0], [1], [0, 0, 1, 1], [], []>} : vector<8x128xf32>, vector<128x32xf32>, vector<8x32xf32> -> vector<8x32xf32>
    %c0_65 = arith.constant 0 : index
    %c0_66 = arith.constant 0 : index
    %104 = vector.load %arg19[%c0_65, %c0_66] : memref<1x32xf32, #tpu.memory_space<vmem>>, vector<1x32xf32>
    %105 = vector.broadcast %104 : vector<1x32xf32> to vector<8x32xf32>
    %106 = arith.addf %103, %105 : vector<8x32xf32>
    %107 = arith.addf %106, %94 : vector<8x32xf32>
    %cst_67 = arith.constant dense<0.000000e+00> : vector<8xf32>
    %108 = vector.multi_reduction <add>, %107, %cst_67 [1] : vector<8x32xf32> to vector<8xf32>
    %109 = vector.shape_cast %108 : vector<8xf32> to vector<8x1xf32>
    %cst_68 = arith.constant 3.200000e+01 : f32
    %110 = vector.broadcast %cst_68 : f32 to vector<8x1xf32>
    %111 = arith.divf %109, %110 : vector<8x1xf32>
    %112 = vector.broadcast %111 : vector<8x1xf32> to vector<8x32xf32>
    %113 = arith.subf %107, %112 : vector<8x32xf32>
    %114 = arith.mulf %113, %113 : vector<8x32xf32>
    %cst_69 = arith.constant dense<0.000000e+00> : vector<8xf32>
    %115 = vector.multi_reduction <add>, %114, %cst_69 [1] : vector<8x32xf32> to vector<8xf32>
    %116 = vector.shape_cast %115 : vector<8xf32> to vector<8x1xf32>
    %cst_70 = arith.constant 3.200000e+01 : f32
    %117 = vector.broadcast %cst_70 : f32 to vector<8x1xf32>
    %118 = arith.divf %116, %117 : vector<8x1xf32>
    %119 = vector.broadcast %111 : vector<8x1xf32> to vector<8x32xf32>
    %120 = arith.subf %107, %119 : vector<8x32xf32>
    %cst_71 = arith.constant 9.99999974E-6 : f32
    %121 = vector.broadcast %cst_71 : f32 to vector<8x1xf32>
    %122 = arith.addf %118, %121 : vector<8x1xf32>
    %123 = math.rsqrt %122 : vector<8x1xf32>
    %124 = vector.broadcast %123 : vector<8x1xf32> to vector<8x32xf32>
    %125 = arith.mulf %120, %124 : vector<8x32xf32>
    %c0_72 = arith.constant 0 : index
    %c0_73 = arith.constant 0 : index
    %126 = vector.load %arg14[%c0_72, %c0_73] : memref<1x32xf32, #tpu.memory_space<vmem>>, vector<1x32xf32>
    %127 = vector.broadcast %126 : vector<1x32xf32> to vector<8x32xf32>
    %128 = arith.mulf %125, %127 : vector<8x32xf32>
    %c0_74 = arith.constant 0 : index
    %c0_75 = arith.constant 0 : index
    %129 = vector.load %arg15[%c0_74, %c0_75] : memref<1x32xf32, #tpu.memory_space<vmem>>, vector<1x32xf32>
    %130 = vector.broadcast %129 : vector<1x32xf32> to vector<8x32xf32>
    %131 = arith.addf %128, %130 : vector<8x32xf32>
    %c0_76 = arith.constant 0 : index
    %c0_77 = arith.constant 0 : index
    %c0_78 = arith.constant 0 : index
    %132 = vector.load %arg20[%c0_76, %c0_77, %c0_78] : memref<1x8x32xf32, #tpu.memory_space<vmem>>, vector<1x8x32xf32>
    %133 = vector.shape_cast %132 : vector<1x8x32xf32> to vector<8x32xf32>
    %134 = vector.shape_cast %131 : vector<8x32xf32> to vector<1x8x32xf32>
    tpu.vector_store %arg20[%c0_76, %c0_77, %c0_78], %134 {strides = array<i32>} : memref<1x8x32xf32, #tpu.memory_space<vmem>>, vector<1x8x32xf32>,
    return
  }
  func.func @transform_0(%arg0: i32) -> (i32, i32, i32) {
    %c0_i32 = arith.constant 0 : i32
    %c0_i32_0 = arith.constant 0 : i32
    %c0_i32_1 = arith.constant 0 : i32
    return %arg0, %c0_i32, %c0_i32_0 : i32, i32, i32
  }
  func.func @transform_1(%arg0: i32) -> (i32, i32, i32) {
    %c0_i32 = arith.constant 0 : i32
    %c0_i32_0 = arith.constant 0 : i32
    %c0_i32_1 = arith.constant 0 : i32
    return %arg0, %c0_i32, %c0_i32_0 : i32, i32, i32
  }
  func.func @transform_2(%arg0: i32) -> (i32, i32, i32) {
    %c0_i32 = arith.constant 0 : i32
    %c0_i32_0 = arith.constant 0 : i32
    %c0_i32_1 = arith.constant 0 : i32
    return %arg0, %c0_i32, %c0_i32_0 : i32, i32, i32
  }
  func.func @transform_3(%arg0: i32) -> (i32, i32, i32) {
    %c0_i32 = arith.constant 0 : i32
    %c0_i32_0 = arith.constant 0 : i32
    %c0_i32_1 = arith.constant 0 : i32
    return %arg0, %c0_i32, %c0_i32_0 : i32, i32, i32
  }
  func.func @transform_4(%arg0: i32) -> (i32, i32, i32) {
    %c0_i32 = arith.constant 0 : i32
    %c0_i32_0 = arith.constant 0 : i32
    %c0_i32_1 = arith.constant 0 : i32
    return %arg0, %c0_i32, %c0_i32_0 : i32, i32, i32
  }
  func.func @transform_5(%arg0: i32) -> (i32, i32, i32) {
    %c0_i32 = arith.constant 0 : i32
    %c0_i32_0 = arith.constant 0 : i32
    %c0_i32_1 = arith.constant 0 : i32
    return %arg0, %c0_i32, %c0_i32_0 : i32, i32, i32
  }
  func.func @transform_6(%arg0: i32) -> (i32, i32) {
    %c0_i32 = arith.constant 0 : i32
    %c0_i32_0 = arith.constant 0 : i32
    %c0_i32_1 = arith.constant 0 : i32
    return %c0_i32, %c0_i32_0 : i32, i32
  }
  func.func @transform_7(%arg0: i32) -> (i32, i32) {
    %c0_i32 = arith.constant 0 : i32
    %c0_i32_0 = arith.constant 0 : i32
    %c0_i32_1 = arith.constant 0 : i32
    return %c0_i32, %c0_i32_0 : i32, i32
  }
  func.func @transform_8(%arg0: i32) -> (i32, i32) {
    %c0_i32 = arith.constant 0 : i32
    %c0_i32_0 = arith.constant 0 : i32
    %c0_i32_1 = arith.constant 0 : i32
    return %c0_i32, %c0_i32_0 : i32, i32
  }
  func.func @transform_9(%arg0: i32) -> (i32, i32, i32) {
    %c0_i32 = arith.constant 0 : i32
    %c0_i32_0 = arith.constant 0 : i32
    %c0_i32_1 = arith.constant 0 : i32
    %c0_i32_2 = arith.constant 0 : i32
    return %c0_i32, %c0_i32_0, %c0_i32_1 : i32, i32, i32
  }
  func.func @transform_10(%arg0: i32) -> (i32, i32) {
    %c0_i32 = arith.constant 0 : i32
    %c0_i32_0 = arith.constant 0 : i32
    %c0_i32_1 = arith.constant 0 : i32
    return %c0_i32, %c0_i32_0 : i32, i32
  }
  func.func @transform_11(%arg0: i32) -> (i32, i32) {
    %c0_i32 = arith.constant 0 : i32
    %c0_i32_0 = arith.constant 0 : i32
    %c0_i32_1 = arith.constant 0 : i32
    return %c0_i32, %c0_i32_0 : i32, i32
  }
  func.func @transform_12(%arg0: i32) -> (i32, i32) {
    %c0_i32 = arith.constant 0 : i32
    %c0_i32_0 = arith.constant 0 : i32
    %c0_i32_1 = arith.constant 0 : i32
    return %c0_i32, %c0_i32_0 : i32, i32
  }
  func.func @transform_13(%arg0: i32) -> (i32, i32) {
    %c0_i32 = arith.constant 0 : i32
    %c0_i32_0 = arith.constant 0 : i32
    %c0_i32_1 = arith.constant 0 : i32
    return %c0_i32, %c0_i32_0 : i32, i32
  }
  func.func @transform_14(%arg0: i32) -> (i32, i32) {
    %c0_i32 = arith.constant 0 : i32
    %c0_i32_0 = arith.constant 0 : i32
    %c0_i32_1 = arith.constant 0 : i32
    return %c0_i32, %c0_i32_0 : i32, i32
  }
  func.func @transform_15(%arg0: i32) -> (i32, i32) {
    %c0_i32 = arith.constant 0 : i32
    %c0_i32_0 = arith.constant 0 : i32
    %c0_i32_1 = arith.constant 0 : i32
    return %c0_i32, %c0_i32_0 : i32, i32
  }
  func.func @transform_16(%arg0: i32) -> (i32, i32) {
    %c0_i32 = arith.constant 0 : i32
    %c0_i32_0 = arith.constant 0 : i32
    %c0_i32_1 = arith.constant 0 : i32
    return %c0_i32, %c0_i32_0 : i32, i32
  }
  func.func @transform_17(%arg0: i32) -> (i32, i32) {
    %c0_i32 = arith.constant 0 : i32
    %c0_i32_0 = arith.constant 0 : i32
    %c0_i32_1 = arith.constant 0 : i32
    return %c0_i32, %c0_i32_0 : i32, i32
  }
  func.func @transform_18(%arg0: i32) -> (i32, i32) {
    %c0_i32 = arith.constant 0 : i32
    %c0_i32_0 = arith.constant 0 : i32
    %c0_i32_1 = arith.constant 0 : i32
    return %c0_i32, %c0_i32_0 : i32, i32
  }
  func.func @transform_19(%arg0: i32) -> (i32, i32, i32) {
    %c0_i32 = arith.constant 0 : i32
    %c0_i32_0 = arith.constant 0 : i32
    %c0_i32_1 = arith.constant 0 : i32
    return %arg0, %c0_i32, %c0_i32_0 : i32, i32, i32
  }
}

</mosaic_0001>

<llo_original>
// kernel: tpu_custom_call.1
$region0: #{tpu_custom_call.1}
  #allocation0 [shape = 'u32[]', space=smem, size = 0x4, offset = 0x4, fixed_abs, tag = 'smem constant byte address 0x4 - core index']
  #allocation1 [shape = 'u32[144,128]{1,0:T(1,128)}', space=vmem, size = 0x12000, scoped, tag = 'internal scratch']
  %s0 = inlined_call_operand.vmem [shape: f32[2,32,8], index: 0, kind: input, shape index: {}]
  %s1 = inlined_call_operand.vmem [shape: f32[2,32,8], index: 1, kind: input, shape index: {}]
  %s2 = inlined_call_operand.vmem [shape: f32[2,32,8], index: 2, kind: input, shape index: {}]
  %s3 = inlined_call_operand.vmem [shape: f32[2,8,32], index: 3, kind: input, shape index: {}]
  %s4 = inlined_call_operand.vmem [shape: f32[2,8,8], index: 4, kind: input, shape index: {}]
  %s5 = inlined_call_operand.vmem [shape: f32[2,8,8], index: 5, kind: input, shape index: {}]
  %s6 = inlined_call_operand.vmem [shape: f32[8,8], index: 6, kind: input, shape index: {}]
  %s7 = inlined_call_operand.vmem [shape: f32[8,8], index: 7, kind: input, shape index: {}]
  %s8 = inlined_call_operand.vmem [shape: f32[8,8], index: 8, kind: input, shape index: {}]
  %s9 = inlined_call_operand.vmem [shape: f32[4,8,32], index: 9, kind: input, shape index: {}]
  %s10 = inlined_call_operand.vmem [shape: f32[1,32], index: 10, kind: input, shape index: {}]
  %s11 = inlined_call_operand.vmem [shape: f32[1,32], index: 11, kind: input, shape index: {}]
  %s12 = inlined_call_operand.vmem [shape: f32[1,32], index: 12, kind: input, shape index: {}]
  %s13 = inlined_call_operand.vmem [shape: f32[1,32], index: 13, kind: input, shape index: {}]
  %s14 = inlined_call_operand.vmem [shape: f32[1,32], index: 14, kind: input, shape index: {}]
  %s15 = inlined_call_operand.vmem [shape: f32[32,128], index: 15, kind: input, shape index: {}]
  %s16 = inlined_call_operand.vmem [shape: f32[1,128], index: 16, kind: input, shape index: {}]
  %s17 = inlined_call_operand.vmem [shape: f32[128,32], index: 17, kind: input, shape index: {}]
  %s18 = inlined_call_operand.vmem [shape: f32[1,32], index: 18, kind: input, shape index: {}]
  %s19 = inlined_call_operand.hbm [shape: f32[2,8,32], index: 19, kind: output, shape index: {}]
  %s20 = sld [smem:[#allocation0]]
  $region109: #{tpu_custom_call.1} parent=0
    _
  %s22 = ssub.s32 1, %s20
  %s23 = scalar_select 0, %s22, %s20
  $region1: #{tpu_custom_call.1} parent=0
    #allocation2 [shape = 'u8[8192]{0}', space=vmem, size = 0x2000, scoped, tag = 'output window, operand 0']
    #allocation3 [shape = 's32[2]{0}', space=sflag, size = 0x8, scoped, tag = 'scoped memory for tpu_custom_call.1']
    %24 = vsyncpa [#allocation3], 0
    %s25 = scalar_lea.sflag [#allocation3], 1
    %26 = vsyncpa %s25, 0
    loop: start=0, step=1, limit=4
    $region2: #{tpu_custom_call.1} parent=1 // loop_pre_header
      _
    $region3: #{tpu_custom_call.1} parent=1 // loop_header
      %s28 = sphi 0, %s32
      %p29 = scmp.ge.s32.totalorder %s28, 4
      %s38 = sphi 0, %s40
      %s41 = sphi 0, %s38
      %s42 = sphi 0, %s41
      %s58 = sphi 0, %s42
      %s64 = sphi 0, %s66
      %s67 = sphi 0, %s64
      %s68 = sphi 0, %s67
      %s84 = sphi 0, %s68
      %s90 = sphi 0, %s92
      %s93 = sphi 0, %s90
      %s94 = sphi 0, %s93
      %s110 = sphi 0, %s94
      %s116 = sphi 0, %s118
      %s119 = sphi 0, %s116
      %s120 = sphi 0, %s119
      %s136 = sphi 0, %s120
      %s142 = sphi 0, %s144
      %s145 = sphi 0, %s142
      %s146 = sphi 0, %s145
      %s162 = sphi 0, %s146
      %s168 = sphi 0, %s170
      %s171 = sphi 0, %s168
      %s172 = sphi 0, %s171
      %s188 = sphi 0, %s172
      %s192 = sphi 0, %s192
      %s194 = sphi 0, %s192
      %s195 = sphi 0, %s194
      %s209 = sphi 0, %s195
      %s213 = sphi 0, %s213
      %s215 = sphi 0, %s213
      %s216 = sphi 0, %s215
      %s230 = sphi 0, %s216
      %s234 = sphi 0, %s234
      %s236 = sphi 0, %s234
      %s237 = sphi 0, %s236
      %s251 = sphi 0, %s237
      %s255 = sphi 0, %s255
      %s257 = sphi 0, %s255
      %s258 = sphi 0, %s257
      %s272 = sphi 0, %s258
      %s276 = sphi 0, %s276
      %s278 = sphi 0, %s276
      %s279 = sphi 0, %s278
      %s293 = sphi 0, %s279
      %s297 = sphi 0, %s297
      %s299 = sphi 0, %s297
      %s300 = sphi 0, %s299
      %s314 = sphi 0, %s300
      %s318 = sphi 0, %s318
      %s320 = sphi 0, %s318
      %s321 = sphi 0, %s320
      %s335 = sphi 0, %s321
      %s339 = sphi 0, %s339
      %s341 = sphi 0, %s339
      %s342 = sphi 0, %s341
      %s356 = sphi 0, %s342
      %s360 = sphi 0, %s360
      %s362 = sphi 0, %s360
      %s363 = sphi 0, %s362
      %s377 = sphi 0, %s363
      %s381 = sphi 0, %s381
      %s383 = sphi 0, %s381
      %s384 = sphi 0, %s383
      %s398 = sphi 0, %s384
      %s402 = sphi 0, %s402
      %s404 = sphi 0, %s402
      %s405 = sphi 0, %s404
      %s419 = sphi 0, %s405
      %s423 = sphi 0, %s423
      %s425 = sphi 0, %s423
      %s426 = sphi 0, %s425
      %s440 = sphi 0, %s426
      %s444 = sphi 0, %s444
      %s446 = sphi 0, %s444
      %s447 = sphi 0, %s446
      %s461 = sphi 0, %s447
      %s467 = sphi 0, %s469
      %s470 = sphi 0, %s467
      %s471 = sphi 0, %s470
      %s487 = sphi 0, %s471
    $region4: #{tpu_custom_call.1} parent=1 // loop_header_branch
      %31 = sbr.rel (%p29) target = $region8
    $region5: #{tpu_custom_call.1} parent=1 // loop_body
      %s33 = ssub.s32 %s28, 1
      %s34 = ssub.s32 %s28, 2
      %s35 = sadd.s32 %s28, 1
      %s36 = ssub.s32 %s28, %s35
      %p37 = scmp.eq.s32.totalorder %s36, 0
      %s39 = sadd.s32 %s38, 1
      %s40 = scalar_select %p37, %s38, %s39
      %p43 = pneg %p37
      %p44 = scmp.eq.s32.totalorder %s28, 1
      %p45 = por %p43, %p44
      %p46 = scmp.ne.s32.totalorder %s38, %s41
      %p47 = scmp.eq.s32.totalorder %s28, 0
      %p48 = por %p46, %p47
      %p49 = scmp.ne.s32.totalorder %s38, %s41
      %p50 = scmp.eq.s32.totalorder %s33, 1
      %p51 = por %p49, %p50
      %p52 = scmp.ne.s32.totalorder %s41, %s42
      %p53 = scmp.eq.s32.totalorder %s33, 0
      %p54 = por %p52, %p53
      %p55 = scmp.ne.s32.totalorder %s41, %s42
      %p56 = scmp.eq.s32.totalorder %s34, 1
      %p57 = por %p55, %p56
      %p59 = scmp.ne.s32.totalorder %s42, %s58
      %p60 = scmp.eq.s32.totalorder %s34, 0
      %p61 = por %p59, %p60
      %s62 = ssub.s32 %s28, %s35
      %p63 = scmp.eq.s32.totalorder %s62, 0
      %s65 = sadd.s32 %s64, 1
      %s66 = scalar_select %p63, %s64, %s65
      %p69 = pneg %p63
      %p70 = scmp.eq.s32.totalorder %s28, 1
      %p71 = por %p69, %p70
      %p72 = scmp.ne.s32.totalorder %s64, %s67
      %p73 = scmp.eq.s32.totalorder %s28, 0
      %p74 = por %p72, %p73
      %p75 = scmp.ne.s32.totalorder %s64, %s67
      %p76 = scmp.eq.s32.totalorder %s33, 1
      %p77 = por %p75, %p76
      %p78 = scmp.ne.s32.totalorder %s67, %s68
      %p79 = scmp.eq.s32.totalorder %s33, 0
      %p80 = por %p78, %p79
      %p81 = scmp.ne.s32.totalorder %s67, %s68
      %p82 = scmp.eq.s32.totalorder %s34, 1
      %p83 = por %p81, %p82
      %p85 = scmp.ne.s32.totalorder %s68, %s84
      %p86 = scmp.eq.s32.totalorder %s34, 0
      %p87 = por %p85, %p86
      %s88 = ssub.s32 %s28, %s35
      %p89 = scmp.eq.s32.totalorder %s88, 0
      %s91 = sadd.s32 %s90, 1
      %s92 = scalar_select %p89, %s90, %s91
      %p95 = pneg %p89
      %p96 = scmp.eq.s32.totalorder %s28, 1
      %p97 = por %p95, %p96
      %p98 = scmp.ne.s32.totalorder %s90, %s93
      %p99 = scmp.eq.s32.totalorder %s28, 0
      %p100 = por %p98, %p99
      %p101 = scmp.ne.s32.totalorder %s90, %s93
      %p102 = scmp.eq.s32.totalorder %s33, 1
      %p103 = por %p101, %p102
      %p104 = scmp.ne.s32.totalorder %s93, %s94
      %p105 = scmp.eq.s32.totalorder %s33, 0
      %p106 = por %p104, %p105
      %p107 = scmp.ne.s32.totalorder %s93, %s94
      %p108 = scmp.eq.s32.totalorder %s34, 1
      %p109 = por %p107, %p108
      %p111 = scmp.ne.s32.totalorder %s94, %s110
      %p112 = scmp.eq.s32.totalorder %s34, 0
      %p113 = por %p111, %p112
      %s114 = ssub.s32 %s28, %s35
      %p115 = scmp.eq.s32.totalorder %s114, 0
      %s117 = sadd.s32 %s116, 1
      %s118 = scalar_select %p115, %s116, %s117
      %p121 = pneg %p115
      %p122 = scmp.eq.s32.totalorder %s28, 1
      %p123 = por %p121, %p122
      %p124 = scmp.ne.s32.totalorder %s116, %s119
      %p125 = scmp.eq.s32.totalorder %s28, 0
      %p126 = por %p124, %p125
      %p127 = scmp.ne.s32.totalorder %s116, %s119
      %p128 = scmp.eq.s32.totalorder %s33, 1
      %p129 = por %p127, %p128
      %p130 = scmp.ne.s32.totalorder %s119, %s120
      %p131 = scmp.eq.s32.totalorder %s33, 0
      %p132 = por %p130, %p131
      %p133 = scmp.ne.s32.totalorder %s119, %s120
      %p134 = scmp.eq.s32.totalorder %s34, 1
      %p135 = por %p133, %p134
      %p137 = scmp.ne.s32.totalorder %s120, %s136
      %p138 = scmp.eq.s32.totalorder %s34, 0
      %p139 = por %p137, %p138
      %s140 = ssub.s32 %s28, %s35
      %p141 = scmp.eq.s32.totalorder %s140, 0
      %s143 = sadd.s32 %s142, 1
      %s144 = scalar_select %p141, %s142, %s143
      %p147 = pneg %p141
      %p148 = scmp.eq.s32.totalorder %s28, 1
      %p149 = por %p147, %p148
      %p150 = scmp.ne.s32.totalorder %s142, %s145
      %p151 = scmp.eq.s32.totalorder %s28, 0
      %p152 = por %p150, %p151
      %p153 = scmp.ne.s32.totalorder %s142, %s145
      %p154 = scmp.eq.s32.totalorder %s33, 1
      %p155 = por %p153, %p154
      %p156 = scmp.ne.s32.totalorder %s145, %s146
      %p157 = scmp.eq.s32.totalorder %s33, 0
      %p158 = por %p156, %p157
      %p159 = scmp.ne.s32.totalorder %s145, %s146
      %p160 = scmp.eq.s32.totalorder %s34, 1
      %p161 = por %p159, %p160
      %p163 = scmp.ne.s32.totalorder %s146, %s162
      %p164 = scmp.eq.s32.totalorder %s34, 0
      %p165 = por %p163, %p164
      %s166 = ssub.s32 %s28, %s35
      %p167 = scmp.eq.s32.totalorder %s166, 0
      %s169 = sadd.s32 %s168, 1
      %s170 = scalar_select %p167, %s168, %s169
      %p173 = pneg %p167
      %p174 = scmp.eq.s32.totalorder %s28, 1
      %p175 = por %p173, %p174
      %p176 = scmp.ne.s32.totalorder %s168, %s171
      %p177 = scmp.eq.s32.totalorder %s28, 0
      %p178 = por %p176, %p177
      %p179 = scmp.ne.s32.totalorder %s168, %s171
      %p180 = scmp.eq.s32.totalorder %s33, 1
      %p181 = por %p179, %p180
      %p182 = scmp.ne.s32.totalorder %s171, %s172
      %p183 = scmp.eq.s32.totalorder %s33, 0
      %p184 = por %p182, %p183
      %p185 = scmp.ne.s32.totalorder %s171, %s172
      %p186 = scmp.eq.s32.totalorder %s34, 1
      %p187 = por %p185, %p186
      %p189 = scmp.ne.s32.totalorder %s172, %s188
      %p190 = scmp.eq.s32.totalorder %s34, 0
      %p191 = por %p189, %p190
      %s193 = sadd.s32 %s192, 1
      %p196 = scmp.eq.s32.totalorder %s28, 1
      %p197 = scmp.ne.s32.totalorder %s192, %s194
      %p198 = scmp.eq.s32.totalorder %s28, 0
      %p199 = por %p197, %p198
      %p200 = scmp.ne.s32.totalorder %s192, %s194
      %p201 = scmp.eq.s32.totalorder %s33, 1
      %p202 = por %p200, %p201
      %p203 = scmp.ne.s32.totalorder %s194, %s195
      %p204 = scmp.eq.s32.totalorder %s33, 0
      %p205 = por %p203, %p204
      %p206 = scmp.ne.s32.totalorder %s194, %s195
      %p207 = scmp.eq.s32.totalorder %s34, 1
      %p208 = por %p206, %p207
      %p210 = scmp.ne.s32.totalorder %s195, %s209
      %p211 = scmp.eq.s32.totalorder %s34, 0
      %p212 = por %p210, %p211
      %s214 = sadd.s32 %s213, 1
      %p217 = scmp.eq.s32.totalorder %s28, 1
      %p218 = scmp.ne.s32.totalorder %s213, %s215
      %p219 = scmp.eq.s32.totalorder %s28, 0
      %p220 = por %p218, %p219
      %p221 = scmp.ne.s32.totalorder %s213, %s215
      %p222 = scmp.eq.s32.totalorder %s33, 1
      %p223 = por %p221, %p222
      %p224 = scmp.ne.s32.totalorder %s215, %s216
      %p225 = scmp.eq.s32.totalorder %s33, 0
      %p226 = por %p224, %p225
      %p227 = scmp.ne.s32.totalorder %s215, %s216
      %p228 = scmp.eq.s32.totalorder %s34, 1
      %p229 = por %p227, %p228
      %p231 = scmp.ne.s32.totalorder %s216, %s230
      %p232 = scmp.eq.s32.totalorder %s34, 0
      %p233 = por %p231, %p232
      %s235 = sadd.s32 %s234, 1
      %p238 = scmp.eq.s32.totalorder %s28, 1
      %p239 = scmp.ne.s32.totalorder %s234, %s236
      %p240 = scmp.eq.s32.totalorder %s28, 0
      %p241 = por %p239, %p240
      %p242 = scmp.ne.s32.totalorder %s234, %s236
      %p243 = scmp.eq.s32.totalorder %s33, 1
      %p244 = por %p242, %p243
      %p245 = scmp.ne.s32.totalorder %s236, %s237
      %p246 = scmp.eq.s32.totalorder %s33, 0
      %p247 = por %p245, %p246
      %p248 = scmp.ne.s32.totalorder %s236, %s237
      %p249 = scmp.eq.s32.totalorder %s34, 1
      %p250 = por %p248, %p249
      %p252 = scmp.ne.s32.totalorder %s237, %s251
      %p253 = scmp.eq.s32.totalorder %s34, 0
      %p254 = por %p252, %p253
      %s256 = sadd.s32 %s255, 1
      %p259 = scmp.eq.s32.totalorder %s28, 1
      %p260 = scmp.ne.s32.totalorder %s255, %s257
      %p261 = scmp.eq.s32.totalorder %s28, 0
      %p262 = por %p260, %p261
      %p263 = scmp.ne.s32.totalorder %s255, %s257
      %p264 = scmp.eq.s32.totalorder %s33, 1
      %p265 = por %p263, %p264
      %p266 = scmp.ne.s32.totalorder %s257, %s258
      %p267 = scmp.eq.s32.totalorder %s33, 0
      %p268 = por %p266, %p267
      %p269 = scmp.ne.s32.totalorder %s257, %s258
      %p270 = scmp.eq.s32.totalorder %s34, 1
      %p271 = por %p269, %p270
      %p273 = scmp.ne.s32.totalorder %s258, %s272
      %p274 = scmp.eq.s32.totalorder %s34, 0
      %p275 = por %p273, %p274
      %s277 = sadd.s32 %s276, 1
      %p280 = scmp.eq.s32.totalorder %s28, 1
      %p281 = scmp.ne.s32.totalorder %s276, %s278
      %p282 = scmp.eq.s32.totalorder %s28, 0
      %p283 = por %p281, %p282
      %p284 = scmp.ne.s32.totalorder %s276, %s278
      %p285 = scmp.eq.s32.totalorder %s33, 1
      %p286 = por %p284, %p285
      %p287 = scmp.ne.s32.totalorder %s278, %s279
      %p288 = scmp.eq.s32.totalorder %s33, 0
      %p289 = por %p287, %p288
      %p290 = scmp.ne.s32.totalorder %s278, %s279
      %p291 = scmp.eq.s32.totalorder %s34, 1
      %p292 = por %p290, %p291
      %p294 = scmp.ne.s32.totalorder %s279, %s293
      %p295 = scmp.eq.s32.totalorder %s34, 0
      %p296 = por %p294, %p295
      %s298 = sadd.s32 %s297, 1
      %p301 = scmp.eq.s32.totalorder %s28, 1
      %p302 = scmp.ne.s32.totalorder %s297, %s299
      %p303 = scmp.eq.s32.totalorder %s28, 0
      %p304 = por %p302, %p303
      %p305 = scmp.ne.s32.totalorder %s297, %s299
      %p306 = scmp.eq.s32.totalorder %s33, 1
      %p307 = por %p305, %p306
      %p308 = scmp.ne.s32.totalorder %s299, %s300
      %p309 = scmp.eq.s32.totalorder %s33, 0
      %p310 = por %p308, %p309
      %p311 = scmp.ne.s32.totalorder %s299, %s300
      %p312 = scmp.eq.s32.totalorder %s34, 1
      %p313 = por %p311, %p312
      %p315 = scmp.ne.s32.totalorder %s300, %s314
      %p316 = scmp.eq.s32.totalorder %s34, 0
      %p317 = por %p315, %p316
      %s319 = sadd.s32 %s318, 1
      %p322 = scmp.eq.s32.totalorder %s28, 1
      %p323 = scmp.ne.s32.totalorder %s318, %s320
      %p324 = scmp.eq.s32.totalorder %s28, 0
      %p325 = por %p323, %p324
      %p326 = scmp.ne.s32.totalorder %s318, %s320
      %p327 = scmp.eq.s32.totalorder %s33, 1
      %p328 = por %p326, %p327
      %p329 = scmp.ne.s32.totalorder %s320, %s321
      %p330 = scmp.eq.s32.totalorder %s33, 0
      %p331 = por %p329, %p330
      %p332 = scmp.ne.s32.totalorder %s320, %s321
      %p333 = scmp.eq.s32.totalorder %s34, 1
      %p334 = por %p332, %p333
      %p336 = scmp.ne.s32.totalorder %s321, %s335
      %p337 = scmp.eq.s32.totalorder %s34, 0
      %p338 = por %p336, %p337
      %s340 = sadd.s32 %s339, 1
      %p343 = scmp.eq.s32.totalorder %s28, 1
      %p344 = scmp.ne.s32.totalorder %s339, %s341
      %p345 = scmp.eq.s32.totalorder %s28, 0
      %p346 = por %p344, %p345
      %p347 = scmp.ne.s32.totalorder %s339, %s341
      %p348 = scmp.eq.s32.totalorder %s33, 1
      %p349 = por %p347, %p348
      %p350 = scmp.ne.s32.totalorder %s341, %s342
      %p351 = scmp.eq.s32.totalorder %s33, 0
      %p352 = por %p350, %p351
      %p353 = scmp.ne.s32.totalorder %s341, %s342
      %p354 = scmp.eq.s32.totalorder %s34, 1
      %p355 = por %p353, %p354
      %p357 = scmp.ne.s32.totalorder %s342, %s356
      %p358 = scmp.eq.s32.totalorder %s34, 0
      %p359 = por %p357, %p358
      %s361 = sadd.s32 %s360, 1
      %p364 = scmp.eq.s32.totalorder %s28, 1
      %p365 = scmp.ne.s32.totalorder %s360, %s362
      %p366 = scmp.eq.s32.totalorder %s28, 0
      %p367 = por %p365, %p366
      %p368 = scmp.ne.s32.totalorder %s360, %s362
      %p369 = scmp.eq.s32.totalorder %s33, 1
      %p370 = por %p368, %p369
      %p371 = scmp.ne.s32.totalorder %s362, %s363
      %p372 = scmp.eq.s32.totalorder %s33, 0
      %p373 = por %p371, %p372
      %p374 = scmp.ne.s32.totalorder %s362, %s363
      %p375 = scmp.eq.s32.totalorder %s34, 1
      %p376 = por %p374, %p375
      %p378 = scmp.ne.s32.totalorder %s363, %s377
      %p379 = scmp.eq.s32.totalorder %s34, 0
      %p380 = por %p378, %p379
      %s382 = sadd.s32 %s381, 1
      %p385 = scmp.eq.s32.totalorder %s28, 1
      %p386 = scmp.ne.s32.totalorder %s381, %s383
      %p387 = scmp.eq.s32.totalorder %s28, 0
      %p388 = por %p386, %p387
      %p389 = scmp.ne.s32.totalorder %s381, %s383
      %p390 = scmp.eq.s32.totalorder %s33, 1
      %p391 = por %p389, %p390
      %p392 = scmp.ne.s32.totalorder %s383, %s384
      %p393 = scmp.eq.s32.totalorder %s33, 0
      %p394 = por %p392, %p393
      %p395 = scmp.ne.s32.totalorder %s383, %s384
      %p396 = scmp.eq.s32.totalorder %s34, 1
      %p397 = por %p395, %p396
      %p399 = scmp.ne.s32.totalorder %s384, %s398
      %p400 = scmp.eq.s32.totalorder %s34, 0
      %p401 = por %p399, %p400
      %s403 = sadd.s32 %s402, 1
      %p406 = scmp.eq.s32.totalorder %s28, 1
      %p407 = scmp.ne.s32.totalorder %s402, %s404
      %p408 = scmp.eq.s32.totalorder %s28, 0
      %p409 = por %p407, %p408
      %p410 = scmp.ne.s32.totalorder %s402, %s404
      %p411 = scmp.eq.s32.totalorder %s33, 1
      %p412 = por %p410, %p411
      %p413 = scmp.ne.s32.totalorder %s404, %s405
      %p414 = scmp.eq.s32.totalorder %s33, 0
      %p415 = por %p413, %p414
      %p416 = scmp.ne.s32.totalorder %s404, %s405
      %p417 = scmp.eq.s32.totalorder %s34, 1
      %p418 = por %p416, %p417
      %p420 = scmp.ne.s32.totalorder %s405, %s419
      %p421 = scmp.eq.s32.totalorder %s34, 0
      %p422 = por %p420, %p421
      %s424 = sadd.s32 %s423, 1
      %p427 = scmp.eq.s32.totalorder %s28, 1
      %p428 = scmp.ne.s32.totalorder %s423, %s425
      %p429 = scmp.eq.s32.totalorder %s28, 0
      %p430 = por %p428, %p429
      %p431 = scmp.ne.s32.totalorder %s423, %s425
      %p432 = scmp.eq.s32.totalorder %s33, 1
      %p433 = por %p431, %p432
      %p434 = scmp.ne.s32.totalorder %s425, %s426
      %p435 = scmp.eq.s32.totalorder %s33, 0
      %p436 = por %p434, %p435
      %p437 = scmp.ne.s32.totalorder %s425, %s426
      %p438 = scmp.eq.s32.totalorder %s34, 1
      %p439 = por %p437, %p438
      %p441 = scmp.ne.s32.totalorder %s426, %s440
      %p442 = scmp.eq.s32.totalorder %s34, 0
      %p443 = por %p441, %p442
      %s445 = sadd.s32 %s444, 1
      %p448 = scmp.eq.s32.totalorder %s28, 1
      %p449 = scmp.ne.s32.totalorder %s444, %s446
      %p450 = scmp.eq.s32.totalorder %s28, 0
      %p451 = por %p449, %p450
      %p452 = scmp.ne.s32.totalorder %s444, %s446
      %p453 = scmp.eq.s32.totalorder %s33, 1
      %p454 = por %p452, %p453
      %p455 = scmp.ne.s32.totalorder %s446, %s447
      %p456 = scmp.eq.s32.totalorder %s33, 0
      %p457 = por %p455, %p456
      %p458 = scmp.ne.s32.totalorder %s446, %s447
      %p459 = scmp.eq.s32.totalorder %s34, 1
      %p460 = por %p458, %p459
      %p462 = scmp.ne.s32.totalorder %s447, %s461
      %p463 = scmp.eq.s32.totalorder %s34, 0
      %p464 = por %p462, %p463
      %s465 = ssub.s32 %s28, %s35
      %p466 = scmp.eq.s32.totalorder %s465, 0
      %s468 = sadd.s32 %s467, 1
      %s469 = scalar_select %p466, %s467, %s468
      %p472 = pneg %p466
      %p473 = scmp.eq.s32.totalorder %s28, 1
      %p474 = por %p472, %p473
      %p475 = scmp.ne.s32.totalorder %s467, %s470
      %p476 = scmp.eq.s32.totalorder %s28, 0
      %p477 = por %p475, %p476
      %p478 = scmp.ne.s32.totalorder %s467, %s470
      %p479 = scmp.eq.s32.totalorder %s33, 1
      %p480 = por %p478, %p479
      %p481 = scmp.ne.s32.totalorder %s470, %s471
      %p482 = scmp.eq.s32.totalorder %s33, 0
      %p483 = por %p481, %p482
      %p484 = scmp.ne.s32.totalorder %s470, %s471
      %p485 = scmp.eq.s32.totalorder %s34, 1
      %p486 = por %p484, %p485
      %p488 = scmp.ne.s32.totalorder %s471, %s487
      %p489 = scmp.eq.s32.totalorder %s34, 0
      %p490 = por %p488, %p489
      %p491 = scmp.le.s32.totalorder 1, %s28
      %p492 = scmp.lt.s32.totalorder %s28, 3
      %p493 = pnand %p491, %p492
      %p494 = pneg %p493
      // Predicated region
      $region9: #{tpu_custom_call.1} parent=5 // pred_check
        _
      $region10: #{tpu_custom_call.1} parent=5 // pred_check_branch
        %496 = sbr.rel (%p493) target = $region12
      $region11: #{tpu_custom_call.1} parent=5 // pred_region
        %s497 = ssub.s32 %s28, 1
        // Predicated region
        $region13: #{tpu_custom_call.1} parent=11 // pred_check
          %p498 = pneg %p205
        $region14: #{tpu_custom_call.1} parent=11 // pred_check_branch
          %500 = sbr.rel (%p498) target = $region16
        $region15: #{tpu_custom_call.1} parent=11 // pred_region
          _
        $region16: #{tpu_custom_call.1} parent=11 // pred_fallthru
          _
        // Predicated region
        $region17: #{tpu_custom_call.1} parent=11 // pred_check
          %p501 = pneg %p226
        $region18: #{tpu_custom_call.1} parent=11 // pred_check_branch
          %503 = sbr.rel (%p501) target = $region20
        $region19: #{tpu_custom_call.1} parent=11 // pred_region
          _
        $region20: #{tpu_custom_call.1} parent=11 // pred_fallthru
          _
        // Predicated region
        $region21: #{tpu_custom_call.1} parent=11 // pred_check
          %p504 = pneg %p247
        $region22: #{tpu_custom_call.1} parent=11 // pred_check_branch
          %506 = sbr.rel (%p504) target = $region24
        $region23: #{tpu_custom_call.1} parent=11 // pred_region
          _
        $region24: #{tpu_custom_call.1} parent=11 // pred_fallthru
          _
        // Predicated region
        $region25: #{tpu_custom_call.1} parent=11 // pred_check
          %p507 = pneg %p268
        $region26: #{tpu_custom_call.1} parent=11 // pred_check_branch
          %509 = sbr.rel (%p507) target = $region28
        $region27: #{tpu_custom_call.1} parent=11 // pred_region
          _
        $region28: #{tpu_custom_call.1} parent=11 // pred_fallthru
          _
        // Predicated region
        $region29: #{tpu_custom_call.1} parent=11 // pred_check
          %p510 = pneg %p289
        $region30: #{tpu_custom_call.1} parent=11 // pred_check_branch
          %512 = sbr.rel (%p510) target = $region32
        $region31: #{tpu_custom_call.1} parent=11 // pred_region
          _
        $region32: #{tpu_custom_call.1} parent=11 // pred_fallthru
          _
        // Predicated region
        $region33: #{tpu_custom_call.1} parent=11 // pred_check
          %p513 = pneg %p310
        $region34: #{tpu_custom_call.1} parent=11 // pred_check_branch
          %515 = sbr.rel (%p513) target = $region36
        $region35: #{tpu_custom_call.1} parent=11 // pred_region
          _
        $region36: #{tpu_custom_call.1} parent=11 // pred_fallthru
          _
        // Predicated region
        $region37: #{tpu_custom_call.1} parent=11 // pred_check
          %p516 = pneg %p331
        $region38: #{tpu_custom_call.1} parent=11 // pred_check_branch
          %518 = sbr.rel (%p516) target = $region40
        $region39: #{tpu_custom_call.1} parent=11 // pred_region
          _
        $region40: #{tpu_custom_call.1} parent=11 // pred_fallthru
          _
        // Predicated region
        $region41: #{tpu_custom_call.1} parent=11 // pred_check
          %p519 = pneg %p352
        $region42: #{tpu_custom_call.1} parent=11 // pred_check_branch
          %521 = sbr.rel (%p519) target = $region44
        $region43: #{tpu_custom_call.1} parent=11 // pred_region
          _
        $region44: #{tpu_custom_call.1} parent=11 // pred_fallthru
          _
        // Predicated region
        $region45: #{tpu_custom_call.1} parent=11 // pred_check
          %p522 = pneg %p373
        $region46: #{tpu_custom_call.1} parent=11 // pred_check_branch
          %524 = sbr.rel (%p522) target = $region48
        $region47: #{tpu_custom_call.1} parent=11 // pred_region
          _
        $region48: #{tpu_custom_call.1} parent=11 // pred_fallthru
          _
        // Predicated region
        $region49: #{tpu_custom_call.1} parent=11 // pred_check
          %p525 = pneg %p394
        $region50: #{tpu_custom_call.1} parent=11 // pred_check_branch
          %527 = sbr.rel (%p525) target = $region52
        $region51: #{tpu_custom_call.1} parent=11 // pred_region
          _
        $region52: #{tpu_custom_call.1} parent=11 // pred_fallthru
          _
        // Predicated region
        $region53: #{tpu_custom_call.1} parent=11 // pred_check
          %p528 = pneg %p415
        $region54: #{tpu_custom_call.1} parent=11 // pred_check_branch
          %530 = sbr.rel (%p528) target = $region56
        $region55: #{tpu_custom_call.1} parent=11 // pred_region
          _
        $region56: #{tpu_custom_call.1} parent=11 // pred_fallthru
          _
        // Predicated region
        $region57: #{tpu_custom_call.1} parent=11 // pred_check
          %p531 = pneg %p436
        $region58: #{tpu_custom_call.1} parent=11 // pred_check_branch
          %533 = sbr.rel (%p531) target = $region60
        $region59: #{tpu_custom_call.1} parent=11 // pred_region
          _
        $region60: #{tpu_custom_call.1} parent=11 // pred_fallthru
          _
        // Predicated region
        $region61: #{tpu_custom_call.1} parent=11 // pred_check
          %p534 = pneg %p457
        $region62: #{tpu_custom_call.1} parent=11 // pred_check_branch
          %536 = sbr.rel (%p534) target = $region64
        $region63: #{tpu_custom_call.1} parent=11 // pred_region
          _
        $region64: #{tpu_custom_call.1} parent=11 // pred_fallthru
          _
      $region12: #{tpu_custom_call.1} parent=5 // pred_fallthru
        _
      %p537 = scmp.lt.s32.totalorder %s28, 2
      // Predicated region
      $region65: #{tpu_custom_call.1} parent=5 // pred_check
        %p538 = pneg %p537
      $region66: #{tpu_custom_call.1} parent=5 // pred_check_branch
        %540 = sbr.rel (%p538) target = $region68
      $region67: #{tpu_custom_call.1} parent=5 // pred_region
        // Predicated region
        $region69: #{tpu_custom_call.1} parent=67 // pred_check
          %p541 = pneg %p48
        $region70: #{tpu_custom_call.1} parent=67 // pred_check_branch
          %543 = sbr.rel (%p541) target = $region72
        $region71: #{tpu_custom_call.1} parent=67 // pred_region
          %p544 = scmp.lt.s32.totalorder %s28, 1
          %s545 = scalar_select %p544, %s28, 1
          %s546 = smul.addr %s545, 4
          %s547 = smul.addr %s546, 8
          %s548 = scalar_lea.vmem %s0, %s547
        $region72: #{tpu_custom_call.1} parent=67 // pred_fallthru
          _
        // Predicated region
        $region73: #{tpu_custom_call.1} parent=67 // pred_check
          %p549 = pneg %p74
        $region74: #{tpu_custom_call.1} parent=67 // pred_check_branch
          %551 = sbr.rel (%p549) target = $region76
        $region75: #{tpu_custom_call.1} parent=67 // pred_region
          %p552 = scmp.lt.s32.totalorder %s28, 1
          %s553 = scalar_select %p552, %s28, 1
          %s554 = smul.addr %s553, 4
          %s555 = smul.addr %s554, 8
          %s556 = scalar_lea.vmem %s1, %s555
        $region76: #{tpu_custom_call.1} parent=67 // pred_fallthru
          _
        // Predicated region
        $region77: #{tpu_custom_call.1} parent=67 // pred_check
          %p557 = pneg %p100
        $region78: #{tpu_custom_call.1} parent=67 // pred_check_branch
          %559 = sbr.rel (%p557) target = $region80
        $region79: #{tpu_custom_call.1} parent=67 // pred_region
          %p560 = scmp.lt.s32.totalorder %s28, 1
          %s561 = scalar_select %p560, %s28, 1
          %s562 = smul.addr %s561, 4
          %s563 = smul.addr %s562, 8
          %s564 = scalar_lea.vmem %s2, %s563
        $region80: #{tpu_custom_call.1} parent=67 // pred_fallthru
          _
        // Predicated region
        $region81: #{tpu_custom_call.1} parent=67 // pred_check
          %p565 = pneg %p126
        $region82: #{tpu_custom_call.1} parent=67 // pred_check_branch
          %567 = sbr.rel (%p565) target = $region84
        $region83: #{tpu_custom_call.1} parent=67 // pred_region
          %p568 = scmp.lt.s32.totalorder %s28, 1
          %s569 = scalar_select %p568, %s28, 1
          %s570 = smul.addr %s569, 8
          %s571 = scalar_lea.vmem %s3, %s570
        $region84: #{tpu_custom_call.1} parent=67 // pred_fallthru
          _
        // Predicated region
        $region85: #{tpu_custom_call.1} parent=67 // pred_check
          %p572 = pneg %p152
        $region86: #{tpu_custom_call.1} parent=67 // pred_check_branch
          %574 = sbr.rel (%p572) target = $region88
        $region87: #{tpu_custom_call.1} parent=67 // pred_region
          %p575 = scmp.lt.s32.totalorder %s28, 1
          %s576 = scalar_select %p575, %s28, 1
          %s577 = smul.addr %s576, 8
          %s578 = scalar_lea.vmem %s4, %s577
        $region88: #{tpu_custom_call.1} parent=67 // pred_fallthru
          _
        // Predicated region
        $region89: #{tpu_custom_call.1} parent=67 // pred_check
          %p579 = pneg %p178
        $region90: #{tpu_custom_call.1} parent=67 // pred_check_branch
          %581 = sbr.rel (%p579) target = $region92
        $region91: #{tpu_custom_call.1} parent=67 // pred_region
          %p582 = scmp.lt.s32.totalorder %s28, 1
          %s583 = scalar_select %p582, %s28, 1
          %s584 = smul.addr %s583, 8
          %s585 = scalar_lea.vmem %s5, %s584
        $region92: #{tpu_custom_call.1} parent=67 // pred_fallthru
          _
      $region68: #{tpu_custom_call.1} parent=5 // pred_fallthru
        _
      %p586 = scmp.le.s32.totalorder 1, %s28
      %p587 = scmp.lt.s32.totalorder %s28, 3
      %p588 = pnand %p586, %p587
      %p589 = pneg %p588
      // Predicated region
      $region93: #{tpu_custom_call.1} parent=5 // pred_check
        _
      $region94: #{tpu_custom_call.1} parent=5 // pred_check_branch
        %591 = sbr.rel (%p588) target = $region96
      $region95: #{tpu_custom_call.1} parent=5 // pred_region
        %s592 = ssub.s32 %s28, 1
        %p593 = scmp.lt.s32.totalorder %s33, 1
        %s594 = scalar_select %p593, %s33, 1
        %s595 = smul.addr %s594, 4
        %s596 = smul.addr %s595, 8
        %s597 = scalar_lea.vmem %s0, %s596
        %p598 = pneg %p54
        %p599 = pneg %p51
        %p600 = scmp.lt.s32.totalorder %s33, 1
        %s601 = scalar_select %p600, %s33, 1
        %s602 = smul.addr %s601, 4
        %s603 = smul.addr %s602, 8
        %s604 = scalar_lea.vmem %s1, %s603
        %p605 = pneg %p80
        %p606 = pneg %p77
        %p607 = scmp.lt.s32.totalorder %s33, 1
        %s608 = scalar_select %p607, %s33, 1
        %s609 = smul.addr %s608, 4
        %s610 = smul.addr %s609, 8
        %s611 = scalar_lea.vmem %s2, %s610
        %p612 = pneg %p106
        %p613 = pneg %p103
        %p614 = scmp.lt.s32.totalorder %s33, 1
        %s615 = scalar_select %p614, %s33, 1
        %s616 = smul.addr %s615, 8
        %s617 = scalar_lea.vmem %s3, %s616
        %p618 = pneg %p132
        %p619 = pneg %p129
        %p620 = scmp.lt.s32.totalorder %s33, 1
        %s621 = scalar_select %p620, %s33, 1
        %s622 = smul.addr %s621, 8
        %s623 = scalar_lea.vmem %s4, %s622
        %p624 = pneg %p158
        %p625 = pneg %p155
        %p626 = scmp.lt.s32.totalorder %s33, 1
        %s627 = scalar_select %p626, %s33, 1
        %s628 = smul.addr %s627, 8
        %s629 = scalar_lea.vmem %s5, %s628
        %p630 = pneg %p184
        %p631 = pneg %p181
        %p632 = pneg %p205
        %p633 = pneg %p202
        %p634 = pneg %p226
        %p635 = pneg %p223
        %p636 = pneg %p247
        %p637 = pneg %p244
        %p638 = pneg %p268
        %p639 = pneg %p265
        %p640 = pneg %p289
        %p641 = pneg %p286
        %p642 = pneg %p310
        %p643 = pneg %p307
        %p644 = pneg %p331
        %p645 = pneg %p328
        %p646 = pneg %p352
        %p647 = pneg %p349
        %p648 = pneg %p373
        %p649 = pneg %p370
        %p650 = pneg %p394
        %p651 = pneg %p391
        %p652 = pneg %p415
        %p653 = pneg %p412
        %p654 = pneg %p436
        %p655 = pneg %p433
        %p656 = pneg %p457
        %p657 = pneg %p454
        %p658 = pneg %p483
        %p659 = pneg %p480
        %s660 = sand.u32 %s470, 1
        %s661 = scalar_lea.sflag [#allocation3], %s660
        %s662 = sand.u32 %s470, 1
        %s663 = smul.addr %s662, 8
        %s664 = scalar_lea.vmem [#allocation2], %s663
        %p665 = scmp.lt.s32.totalorder %s33, 1
        %s666 = scalar_select %p665, %s33, 1
        %s667 = smul.addr %s666, 4
        %s668 = smul.addr %s667, 8
        %s669 = scalar_lea.vmem %s0, %s668
        %p670 = scmp.lt.s32.totalorder %s33, 1
        %s671 = scalar_select %p670, %s33, 1
        %s672 = smul.addr %s671, 4
        %s673 = smul.addr %s672, 8
        %s674 = scalar_lea.vmem %s1, %s673
        %p675 = scmp.lt.s32.totalorder %s33, 1
        %s676 = scalar_select %p675, %s33, 1
        %s677 = smul.addr %s676, 4
        %s678 = smul.addr %s677, 8
        %s679 = scalar_lea.vmem %s2, %s678
        %p680 = scmp.lt.s32.totalorder %s33, 1
        %s681 = scalar_select %p680, %s33, 1
        %s682 = smul.addr %s681, 8
        %s683 = scalar_lea.vmem %s3, %s682
        %p684 = scmp.lt.s32.totalorder %s33, 1
        %s685 = scalar_select %p684, %s33, 1
        %s686 = smul.addr %s685, 8
        %s687 = scalar_lea.vmem %s4, %s686
        %p688 = scmp.lt.s32.totalorder %s33, 1
        %s689 = scalar_select %p688, %s33, 1
        %s690 = smul.addr %s689, 8
        %s691 = scalar_lea.vmem %s5, %s690
        %v692 = vld [vmem:[%s669] sm:$0xff]
        %v693 = vld [vmem:[%s669 + $0x8] sm:$0xff]
        %v694 = vld [vmem:[%s669 + $0x10] sm:$0xff]
        %v695 = vld [vmem:[%s669 + $0x18] sm:$0xff]
        %v696 = vld [vmem:[%s674] sm:$0xff]
        %v697 = vld [vmem:[%s674 + $0x8] sm:$0xff]
        %v698 = vld [vmem:[%s674 + $0x10] sm:$0xff]
        %v699 = vld [vmem:[%s674 + $0x18] sm:$0xff]
        %v700 = vld [vmem:[%s679] sm:$0xff]
        %v701 = vld [vmem:[%s679 + $0x8] sm:$0xff]
        %v702 = vld [vmem:[%s679 + $0x10] sm:$0xff]
        %v703 = vld [vmem:[%s679 + $0x18] sm:$0xff]
        %v704 = vld [vmem:[%s6] sm:$0xff]
        %vm705 = vcmask 64512
        %v707 = vsel %vm705, %v692, 0
        %v710 = vsel %vm705, %v693, 0
        %v713 = vsel %vm705, %v694, 0
        %v716 = vsel %vm705, %v695, 0
        %718 = vmatprep.subr.mxu0 0.0
        %719 = vmatpush1.msra.mxu0 %v704
        %720 = vmatprep.subr.mxu0 0.0
        %721 = vmatpush1.msra.mxu0 0.0
        %722 = vmatprep.subr.mxu0 0.0
        %723 = vmatpush1.msra.mxu0 0.0
        %724 = vmatprep.subr.mxu0 0.0
        %725 = vmatpush1.msra.mxu0 0.0
        %726 = vmatprep.subr.mxu0 0.0
        %727 = vmatpush1.msra.mxu0 0.0
        %728 = vmatprep.subr.mxu0 0.0
        %729 = vmatpush1.msra.mxu0 0.0
        %730 = vmatprep.subr.mxu0 0.0
        %731 = vmatpush1.msra.mxu0 0.0
        %732 = vmatprep.subr.mxu0 0.0
        %733 = vmatpush1.msra.mxu0 0.0
        %734 = vmatprep.subr.mxu0 0.0
        %735 = vmatpush1.msra.mxu0 0.0
        %736 = vmatprep.subr.mxu0 0.0
        %737 = vmatpush1.msra.mxu0 0.0
        %738 = vmatprep.subr.mxu0 0.0
        %739 = vmatpush1.msra.mxu0 0.0
        %740 = vmatprep.subr.mxu0 0.0
        %741 = vmatpush1.msra.mxu0 0.0
        %742 = vmatprep.subr.mxu0 0.0
        %743 = vmatpush1.msra.mxu0 0.0
        %744 = vmatprep.subr.mxu0 0.0
        %745 = vmatpush1.msra.mxu0 0.0
        %746 = vmatprep.subr.mxu0 0.0
        %747 = vmatpush1.msra.mxu0 0.0
        %748 = vmatprep.subr.mxu0 0.0
        %749 = vmatpush1.msra.mxu0 0.0
        %750 = vmatprep.subr.mxu0 0.0
        %751 = vmatpush1.msra.mxu0 0.0
        %752 = vmatprep.subr.mxu0 0.0
        %753 = vmatpush1.msra.mxu0 0.0
        %754 = vmatprep.subr.mxu0 0.0
        %755 = vmatpush1.msra.mxu0 0.0
        %756 = vmatprep.subr.mxu0 0.0
        %757 = vmatpush1.msra.mxu0 0.0
        %758 = vmatprep.subr.mxu0 0.0
        %759 = vmatpush1.msra.mxu0 0.0
        %760 = vmatprep.subr.mxu0 0.0
        %761 = vmatpush1.msra.mxu0 0.0
        %762 = vmatprep.subr.mxu0 0.0
        %763 = vmatpush1.msra.mxu0 0.0
        %764 = vmatprep.subr.mxu0 0.0
        %765 = vmatpush1.msra.mxu0 0.0
        %766 = vmatprep.subr.mxu0 0.0
        %767 = vmatpush1.msra.mxu0 0.0
        %768 = vmatprep.subr.mxu0 0.0
        %769 = vmatpush1.msra.mxu0 0.0
        %770 = vmatprep.subr.mxu0 0.0
        %771 = vmatpush1.msra.mxu0 0.0
        %772 = vmatprep.subr.mxu0 0.0
        %773 = vmatpush1.msra.mxu0 0.0
        %774 = vmatprep.subr.mxu0 0.0
        %775 = vmatpush1.msra.mxu0 0.0
        %776 = vmatprep.subr.mxu0 0.0
        %777 = vmatpush1.msra.mxu0 0.0
        %778 = vmatprep.subr.mxu0 0.0
        %779 = vmatpush1.msra.mxu0 0.0
        %780 = vmatprep.subr.mxu0 0.0
        %781 = vmatpush1.msra.mxu0 0.0
        %782 = vmatprep.mubr.f32.mxu0 0.0
        %783 = vmatmul.mubr.f32.gmra.mrb[0].mxu0 %v707
        %v784 = vpop.f32.mrb[0].mxu0
        %v785 = vadd.f32 0.0, %v784
        %v786 = vpop.f32.mrb[0].mxu0
        %787 = vmatprep.mubr.f32.mxu0 0.0
        %788 = vmatmul.mubr.f32.gmra.mrb[0].mxu0 %v710
        %v789 = vpop.f32.mrb[0].mxu0
        %v790 = vadd.f32 0.0, %v789
        %v791 = vpop.f32.mrb[0].mxu0
        %792 = vmatprep.mubr.f32.mxu0 0.0
        %793 = vmatmul.mubr.f32.gmra.mrb[0].mxu0 %v713
        %v794 = vpop.f32.mrb[0].mxu0
        %v795 = vadd.f32 0.0, %v794
        %v796 = vpop.f32.mrb[0].mxu0
        %797 = vmatprep.mubr.f32.mxu0 0.0
        %798 = vmatmul.mubr.f32.gmra.mrb[0].mxu0 %v716
        %v799 = vpop.f32.mrb[0].mxu0
        %v800 = vadd.f32 0.0, %v799
        %v801 = vpop.f32.mrb[0].mxu0
        %802 = vdwg.mxu0
        %v803 = vld [vmem:[%s7] sm:$0xff]
        %v805 = vsel %vm705, %v696, 0
        %v808 = vsel %vm705, %v697, 0
        %v811 = vsel %vm705, %v698, 0
        %v814 = vsel %vm705, %v699, 0
        %816 = vmatprep.subr.mxu0 0.0
        %817 = vmatpush1.msra.mxu0 %v803
        %818 = vmatprep.subr.mxu0 0.0
        %819 = vmatpush1.msra.mxu0 0.0
        %820 = vmatprep.subr.mxu0 0.0
        %821 = vmatpush1.msra.mxu0 0.0
        %822 = vmatprep.subr.mxu0 0.0
        %823 = vmatpush1.msra.mxu0 0.0
        %824 = vmatprep.subr.mxu0 0.0
        %825 = vmatpush1.msra.mxu0 0.0
        %826 = vmatprep.subr.mxu0 0.0
        %827 = vmatpush1.msra.mxu0 0.0
        %828 = vmatprep.subr.mxu0 0.0
        %829 = vmatpush1.msra.mxu0 0.0
        %830 = vmatprep.subr.mxu0 0.0
        %831 = vmatpush1.msra.mxu0 0.0
        %832 = vmatprep.subr.mxu0 0.0
        %833 = vmatpush1.msra.mxu0 0.0
        %834 = vmatprep.subr.mxu0 0.0
        %835 = vmatpush1.msra.mxu0 0.0
        %836 = vmatprep.subr.mxu0 0.0
        %837 = vmatpush1.msra.mxu0 0.0
        %838 = vmatprep.subr.mxu0 0.0
        %839 = vmatpush1.msra.mxu0 0.0
        %840 = vmatprep.subr.mxu0 0.0
        %841 = vmatpush1.msra.mxu0 0.0
        %842 = vmatprep.subr.mxu0 0.0
        %843 = vmatpush1.msra.mxu0 0.0
        %844 = vmatprep.subr.mxu0 0.0
        %845 = vmatpush1.msra.mxu0 0.0
        %846 = vmatprep.subr.mxu0 0.0
        %847 = vmatpush1.msra.mxu0 0.0
        %848 = vmatprep.subr.mxu0 0.0
        %849 = vmatpush1.msra.mxu0 0.0
        %850 = vmatprep.subr.mxu0 0.0
        %851 = vmatpush1.msra.mxu0 0.0
        %852 = vmatprep.subr.mxu0 0.0
        %853 = vmatpush1.msra.mxu0 0.0
        %854 = vmatprep.subr.mxu0 0.0
        %855 = vmatpush1.msra.mxu0 0.0
        %856 = vmatprep.subr.mxu0 0.0
        %857 = vmatpush1.msra.mxu0 0.0
        %858 = vmatprep.subr.mxu0 0.0
        %859 = vmatpush1.msra.mxu0 0.0
        %860 = vmatprep.subr.mxu0 0.0
        %861 = vmatpush1.msra.mxu0 0.0
        %862 = vmatprep.subr.mxu0 0.0
        %863 = vmatpush1.msra.mxu0 0.0
        %864 = vmatprep.subr.mxu0 0.0
        %865 = vmatpush1.msra.mxu0 0.0
        %866 = vmatprep.subr.mxu0 0.0
        %867 = vmatpush1.msra.mxu0 0.0
        %868 = vmatprep.subr.mxu0 0.0
        %869 = vmatpush1.msra.mxu0 0.0
        %870 = vmatprep.subr.mxu0 0.0
        %871 = vmatpush1.msra.mxu0 0.0
        %872 = vmatprep.subr.mxu0 0.0
        %873 = vmatpush1.msra.mxu0 0.0
        %874 = vmatprep.subr.mxu0 0.0
        %875 = vmatpush1.msra.mxu0 0.0
        %876 = vmatprep.subr.mxu0 0.0
        %877 = vmatpush1.msra.mxu0 0.0
        %878 = vmatprep.subr.mxu0 0.0
        %879 = vmatpush1.msra.mxu0 0.0
        %880 = vmatprep.mubr.f32.mxu0 0.0
        %881 = vmatmul.mubr.f32.gmra.mrb[0].mxu0 %v805
        %v882 = vpop.f32.mrb[0].mxu0
        %v883 = vadd.f32 0.0, %v882
        %v884 = vpop.f32.mrb[0].mxu0
        %885 = vmatprep.mubr.f32.mxu0 0.0
        %886 = vmatmul.mubr.f32.gmra.mrb[0].mxu0 %v808
        %v887 = vpop.f32.mrb[0].mxu0
        %v888 = vadd.f32 0.0, %v887
        %v889 = vpop.f32.mrb[0].mxu0
        %890 = vmatprep.mubr.f32.mxu0 0.0
        %891 = vmatmul.mubr.f32.gmra.mrb[0].mxu0 %v811
        %v892 = vpop.f32.mrb[0].mxu0
        %v893 = vadd.f32 0.0, %v892
        %v894 = vpop.f32.mrb[0].mxu0
        %895 = vmatprep.mubr.f32.mxu0 0.0
        %896 = vmatmul.mubr.f32.gmra.mrb[0].mxu0 %v814
        %v897 = vpop.f32.mrb[0].mxu0
        %v898 = vadd.f32 0.0, %v897
        %v899 = vpop.f32.mrb[0].mxu0
        %900 = vdwg.mxu0
        %v901 = vld [vmem:[%s8] sm:$0xff]
        %v903 = vsel %vm705, %v700, 0
        %v906 = vsel %vm705, %v701, 0
        %v909 = vsel %vm705, %v702, 0
        %v912 = vsel %vm705, %v703, 0
        %914 = vmatprep.subr.mxu0 0.0
        %915 = vmatpush1.msra.mxu0 %v901
        %916 = vmatprep.subr.mxu0 0.0
        %917 = vmatpush1.msra.mxu0 0.0
        %918 = vmatprep.subr.mxu0 0.0
        %919 = vmatpush1.msra.mxu0 0.0
        %920 = vmatprep.subr.mxu0 0.0
        %921 = vmatpush1.msra.mxu0 0.0
        %922 = vmatprep.subr.mxu0 0.0
        %923 = vmatpush1.msra.mxu0 0.0
        %924 = vmatprep.subr.mxu0 0.0
        %925 = vmatpush1.msra.mxu0 0.0
        %926 = vmatprep.subr.mxu0 0.0
        %927 = vmatpush1.msra.mxu0 0.0
        %928 = vmatprep.subr.mxu0 0.0
        %929 = vmatpush1.msra.mxu0 0.0
        %930 = vmatprep.subr.mxu0 0.0
        %931 = vmatpush1.msra.mxu0 0.0
        %932 = vmatprep.subr.mxu0 0.0
        %933 = vmatpush1.msra.mxu0 0.0
        %934 = vmatprep.subr.mxu0 0.0
        %935 = vmatpush1.msra.mxu0 0.0
        %936 = vmatprep.subr.mxu0 0.0
        %937 = vmatpush1.msra.mxu0 0.0
        %938 = vmatprep.subr.mxu0 0.0
        %939 = vmatpush1.msra.mxu0 0.0
        %940 = vmatprep.subr.mxu0 0.0
        %941 = vmatpush1.msra.mxu0 0.0
        %942 = vmatprep.subr.mxu0 0.0
        %943 = vmatpush1.msra.mxu0 0.0
        %944 = vmatprep.subr.mxu0 0.0
        %945 = vmatpush1.msra.mxu0 0.0
        %946 = vmatprep.subr.mxu0 0.0
        %947 = vmatpush1.msra.mxu0 0.0
        %948 = vmatprep.subr.mxu0 0.0
        %949 = vmatpush1.msra.mxu0 0.0
        %950 = vmatprep.subr.mxu0 0.0
        %951 = vmatpush1.msra.mxu0 0.0
        %952 = vmatprep.subr.mxu0 0.0
        %953 = vmatpush1.msra.mxu0 0.0
        %954 = vmatprep.subr.mxu0 0.0
        %955 = vmatpush1.msra.mxu0 0.0
        %956 = vmatprep.subr.mxu0 0.0
        %957 = vmatpush1.msra.mxu0 0.0
        %958 = vmatprep.subr.mxu0 0.0
        %959 = vmatpush1.msra.mxu0 0.0
        %960 = vmatprep.subr.mxu0 0.0
        %961 = vmatpush1.msra.mxu0 0.0
        %962 = vmatprep.subr.mxu0 0.0
        %963 = vmatpush1.msra.mxu0 0.0
        %964 = vmatprep.subr.mxu0 0.0
        %965 = vmatpush1.msra.mxu0 0.0
        %966 = vmatprep.subr.mxu0 0.0
        %967 = vmatpush1.msra.mxu0 0.0
        %968 = vmatprep.subr.mxu0 0.0
        %969 = vmatpush1.msra.mxu0 0.0
        %970 = vmatprep.subr.mxu0 0.0
        %971 = vmatpush1.msra.mxu0 0.0
        %972 = vmatprep.subr.mxu0 0.0
        %973 = vmatpush1.msra.mxu0 0.0
        %974 = vmatprep.subr.mxu0 0.0
        %975 = vmatpush1.msra.mxu0 0.0
        %976 = vmatprep.subr.mxu0 0.0
        %977 = vmatpush1.msra.mxu0 0.0
        %978 = vmatprep.mubr.f32.mxu0 0.0
        %979 = vmatmul.mubr.f32.gmra.mrb[0].mxu0 %v903
        %v980 = vpop.f32.mrb[0].mxu0
        %v981 = vadd.f32 0.0, %v980
        %v982 = vpop.f32.mrb[0].mxu0
        %983 = vmatprep.mubr.f32.mxu0 0.0
        %984 = vmatmul.mubr.f32.gmra.mrb[0].mxu0 %v906
        %v985 = vpop.f32.mrb[0].mxu0
        %v986 = vadd.f32 0.0, %v985
        %v987 = vpop.f32.mrb[0].mxu0
        %988 = vmatprep.mubr.f32.mxu0 0.0
        %989 = vmatmul.mubr.f32.gmra.mrb[0].mxu0 %v909
        %v990 = vpop.f32.mrb[0].mxu0
        %v991 = vadd.f32 0.0, %v990
        %v992 = vpop.f32.mrb[0].mxu0
        %993 = vmatprep.mubr.f32.mxu0 0.0
        %994 = vmatmul.mubr.f32.gmra.mrb[0].mxu0 %v912
        %v995 = vpop.f32.mrb[0].mxu0
        %v996 = vadd.f32 0.0, %v995
        %v997 = vpop.f32.mrb[0].mxu0
        %998 = vdwg.mxu0
        %v1000 = vsel %vm705, %v981, 0
        %v1003 = vsel %vm705, %v883, 0
        %1005 = vmatprep.subr.mxu0 0.0
        %1006 = vmatpush1.xpose.msra.mxu0 %v1003
        %1007 = vmatprep.subr.mxu0 0.0
        %1008 = vmatpush1.xpose.msra.mxu0 0.0
        %1009 = vmatprep.subr.mxu0 0.0
        %1010 = vmatpush1.xpose.msra.mxu0 0.0
        %1011 = vmatprep.subr.mxu0 0.0
        %1012 = vmatpush1.xpose.msra.mxu0 0.0
        %1013 = vmatprep.subr.mxu0 0.0
        %1014 = vmatpush1.xpose.msra.mxu0 0.0
        %1015 = vmatprep.subr.mxu0 0.0
        %1016 = vmatpush1.xpose.msra.mxu0 0.0
        %1017 = vmatprep.subr.mxu0 0.0
        %1018 = vmatpush1.xpose.msra.mxu0 0.0
        %1019 = vmatprep.subr.mxu0 0.0
        %1020 = vmatpush1.xpose.msra.mxu0 0.0
        %1021 = vmatprep.subr.mxu0 0.0
        %1022 = vmatpush1.xpose.msra.mxu0 0.0
        %1023 = vmatprep.subr.mxu0 0.0
        %1024 = vmatpush1.xpose.msra.mxu0 0.0
        %1025 = vmatprep.subr.mxu0 0.0
        %1026 = vmatpush1.xpose.msra.mxu0 0.0
        %1027 = vmatprep.subr.mxu0 0.0
        %1028 = vmatpush1.xpose.msra.mxu0 0.0
        %1029 = vmatprep.subr.mxu0 0.0
        %1030 = vmatpush1.xpose.msra.mxu0 0.0
        %1031 = vmatprep.subr.mxu0 0.0
        %1032 = vmatpush1.xpose.msra.mxu0 0.0
        %1033 = vmatprep.subr.mxu0 0.0
        %1034 = vmatpush1.xpose.msra.mxu0 0.0
        %1035 = vmatprep.subr.mxu0 0.0
        %1036 = vmatpush1.xpose.msra.mxu0 0.0
        %1037 = vmatprep.subr.mxu0 0.0
        %1038 = vmatpush1.xpose.msra.mxu0 0.0
        %1039 = vmatprep.subr.mxu0 0.0
        %1040 = vmatpush1.xpose.msra.mxu0 0.0
        %1041 = vmatprep.subr.mxu0 0.0
        %1042 = vmatpush1.xpose.msra.mxu0 0.0
        %1043 = vmatprep.subr.mxu0 0.0
        %1044 = vmatpush1.xpose.msra.mxu0 0.0
        %1045 = vmatprep.subr.mxu0 0.0
        %1046 = vmatpush1.xpose.msra.mxu0 0.0
        %1047 = vmatprep.subr.mxu0 0.0
        %1048 = vmatpush1.xpose.msra.mxu0 0.0
        %1049 = vmatprep.subr.mxu0 0.0
        %1050 = vmatpush1.xpose.msra.mxu0 0.0
        %1051 = vmatprep.subr.mxu0 0.0
        %1052 = vmatpush1.xpose.msra.mxu0 0.0
        %1053 = vmatprep.subr.mxu0 0.0
        %1054 = vmatpush1.xpose.msra.mxu0 0.0
        %1055 = vmatprep.subr.mxu0 0.0
        %1056 = vmatpush1.xpose.msra.mxu0 0.0
        %1057 = vmatprep.subr.mxu0 0.0
        %1058 = vmatpush1.xpose.msra.mxu0 0.0
        %1059 = vmatprep.subr.mxu0 0.0
        %1060 = vmatpush1.xpose.msra.mxu0 0.0
        %1061 = vmatprep.subr.mxu0 0.0
        %1062 = vmatpush1.xpose.msra.mxu0 0.0
        %1063 = vmatprep.subr.mxu0 0.0
        %1064 = vmatpush1.xpose.msra.mxu0 0.0
        %1065 = vmatprep.subr.mxu0 0.0
        %1066 = vmatpush1.xpose.msra.mxu0 0.0
        %1067 = vmatprep.subr.mxu0 0.0
        %1068 = vmatpush1.xpose.msra.mxu0 0.0
        %1069 = vmatprep.mubr.f32.mxu0 0.0
        %1070 = vmatmul.mubr.f32.gmra.mrb[0].mxu0 %v1000
        %v1071 = vpop.f32.mrb[0].mxu0
        %v1072 = vadd.f32 0.0, %v1071
        %v1073 = vpop.f32.mrb[0].mxu0
        %1074 = vdwg.mxu0
        %v1076 = vsel %vm705, %v986, 0
        %v1079 = vsel %vm705, %v888, 0
        %1081 = vmatprep.subr.mxu0 0.0
        %1082 = vmatpush1.xpose.msra.mxu0 %v1079
        %1083 = vmatprep.subr.mxu0 0.0
        %1084 = vmatpush1.xpose.msra.mxu0 0.0
        %1085 = vmatprep.subr.mxu0 0.0
        %1086 = vmatpush1.xpose.msra.mxu0 0.0
        %1087 = vmatprep.subr.mxu0 0.0
        %1088 = vmatpush1.xpose.msra.mxu0 0.0
        %1089 = vmatprep.subr.mxu0 0.0
        %1090 = vmatpush1.xpose.msra.mxu0 0.0
        %1091 = vmatprep.subr.mxu0 0.0
        %1092 = vmatpush1.xpose.msra.mxu0 0.0
        %1093 = vmatprep.subr.mxu0 0.0
        %1094 = vmatpush1.xpose.msra.mxu0 0.0
        %1095 = vmatprep.subr.mxu0 0.0
        %1096 = vmatpush1.xpose.msra.mxu0 0.0
        %1097 = vmatprep.subr.mxu0 0.0
        %1098 = vmatpush1.xpose.msra.mxu0 0.0
        %1099 = vmatprep.subr.mxu0 0.0
        %1100 = vmatpush1.xpose.msra.mxu0 0.0
        %1101 = vmatprep.subr.mxu0 0.0
        %1102 = vmatpush1.xpose.msra.mxu0 0.0
        %1103 = vmatprep.subr.mxu0 0.0
        %1104 = vmatpush1.xpose.msra.mxu0 0.0
        %1105 = vmatprep.subr.mxu0 0.0
        %1106 = vmatpush1.xpose.msra.mxu0 0.0
        %1107 = vmatprep.subr.mxu0 0.0
        %1108 = vmatpush1.xpose.msra.mxu0 0.0
        %1109 = vmatprep.subr.mxu0 0.0
        %1110 = vmatpush1.xpose.msra.mxu0 0.0
        %1111 = vmatprep.subr.mxu0 0.0
        %1112 = vmatpush1.xpose.msra.mxu0 0.0
        %1113 = vmatprep.subr.mxu0 0.0
        %1114 = vmatpush1.xpose.msra.mxu0 0.0
        %1115 = vmatprep.subr.mxu0 0.0
        %1116 = vmatpush1.xpose.msra.mxu0 0.0
        %1117 = vmatprep.subr.mxu0 0.0
        %1118 = vmatpush1.xpose.msra.mxu0 0.0
        %1119 = vmatprep.subr.mxu0 0.0
        %1120 = vmatpush1.xpose.msra.mxu0 0.0
        %1121 = vmatprep.subr.mxu0 0.0
        %1122 = vmatpush1.xpose.msra.mxu0 0.0
        %1123 = vmatprep.subr.mxu0 0.0
        %1124 = vmatpush1.xpose.msra.mxu0 0.0
        %1125 = vmatprep.subr.mxu0 0.0
        %1126 = vmatpush1.xpose.msra.mxu0 0.0
        %1127 = vmatprep.subr.mxu0 0.0
        %1128 = vmatpush1.xpose.msra.mxu0 0.0
        %1129 = vmatprep.subr.mxu0 0.0
        %1130 = vmatpush1.xpose.msra.mxu0 0.0
        %1131 = vmatprep.subr.mxu0 0.0
        %1132 = vmatpush1.xpose.msra.mxu0 0.0
        %1133 = vmatprep.subr.mxu0 0.0
        %1134 = vmatpush1.xpose.msra.mxu0 0.0
        %1135 = vmatprep.subr.mxu0 0.0
        %1136 = vmatpush1.xpose.msra.mxu0 0.0
        %1137 = vmatprep.subr.mxu0 0.0
        %1138 = vmatpush1.xpose.msra.mxu0 0.0
        %1139 = vmatprep.subr.mxu0 0.0
        %1140 = vmatpush1.xpose.msra.mxu0 0.0
        %1141 = vmatprep.subr.mxu0 0.0
        %1142 = vmatpush1.xpose.msra.mxu0 0.0
        %1143 = vmatprep.subr.mxu0 0.0
        %1144 = vmatpush1.xpose.msra.mxu0 0.0
        %1145 = vmatprep.mubr.f32.mxu0 0.0
        %1146 = vmatmul.mubr.f32.gmra.mrb[0].mxu0 %v1076
        %v1147 = vpop.f32.mrb[0].mxu0
        %v1148 = vadd.f32 0.0, %v1147
        %v1149 = vpop.f32.mrb[0].mxu0
        %1150 = vdwg.mxu0
        %v1152 = vsel %vm705, %v991, 0
        %v1155 = vsel %vm705, %v893, 0
        %1157 = vmatprep.subr.mxu0 0.0
        %1158 = vmatpush1.xpose.msra.mxu0 %v1155
        %1159 = vmatprep.subr.mxu0 0.0
        %1160 = vmatpush1.xpose.msra.mxu0 0.0
        %1161 = vmatprep.subr.mxu0 0.0
        %1162 = vmatpush1.xpose.msra.mxu0 0.0
        %1163 = vmatprep.subr.mxu0 0.0
        %1164 = vmatpush1.xpose.msra.mxu0 0.0
        %1165 = vmatprep.subr.mxu0 0.0
        %1166 = vmatpush1.xpose.msra.mxu0 0.0
        %1167 = vmatprep.subr.mxu0 0.0
        %1168 = vmatpush1.xpose.msra.mxu0 0.0
        %1169 = vmatprep.subr.mxu0 0.0
        %1170 = vmatpush1.xpose.msra.mxu0 0.0
        %1171 = vmatprep.subr.mxu0 0.0
        %1172 = vmatpush1.xpose.msra.mxu0 0.0
        %1173 = vmatprep.subr.mxu0 0.0
        %1174 = vmatpush1.xpose.msra.mxu0 0.0
        %1175 = vmatprep.subr.mxu0 0.0
        %1176 = vmatpush1.xpose.msra.mxu0 0.0
        %1177 = vmatprep.subr.mxu0 0.0
        %1178 = vmatpush1.xpose.msra.mxu0 0.0
        %1179 = vmatprep.subr.mxu0 0.0
        %1180 = vmatpush1.xpose.msra.mxu0 0.0
        %1181 = vmatprep.subr.mxu0 0.0
        %1182 = vmatpush1.xpose.msra.mxu0 0.0
        %1183 = vmatprep.subr.mxu0 0.0
        %1184 = vmatpush1.xpose.msra.mxu0 0.0
        %1185 = vmatprep.subr.mxu0 0.0
        %1186 = vmatpush1.xpose.msra.mxu0 0.0
        %1187 = vmatprep.subr.mxu0 0.0
        %1188 = vmatpush1.xpose.msra.mxu0 0.0
        %1189 = vmatprep.subr.mxu0 0.0
        %1190 = vmatpush1.xpose.msra.mxu0 0.0
        %1191 = vmatprep.subr.mxu0 0.0
        %1192 = vmatpush1.xpose.msra.mxu0 0.0
        %1193 = vmatprep.subr.mxu0 0.0
        %1194 = vmatpush1.xpose.msra.mxu0 0.0
        %1195 = vmatprep.subr.mxu0 0.0
        %1196 = vmatpush1.xpose.msra.mxu0 0.0
        %1197 = vmatprep.subr.mxu0 0.0
        %1198 = vmatpush1.xpose.msra.mxu0 0.0
        %1199 = vmatprep.subr.mxu0 0.0
        %1200 = vmatpush1.xpose.msra.mxu0 0.0
        %1201 = vmatprep.subr.mxu0 0.0
        %1202 = vmatpush1.xpose.msra.mxu0 0.0
        %1203 = vmatprep.subr.mxu0 0.0
        %1204 = vmatpush1.xpose.msra.mxu0 0.0
        %1205 = vmatprep.subr.mxu0 0.0
        %1206 = vmatpush1.xpose.msra.mxu0 0.0
        %1207 = vmatprep.subr.mxu0 0.0
        %1208 = vmatpush1.xpose.msra.mxu0 0.0
        %1209 = vmatprep.subr.mxu0 0.0
        %1210 = vmatpush1.xpose.msra.mxu0 0.0
        %1211 = vmatprep.subr.mxu0 0.0
        %1212 = vmatpush1.xpose.msra.mxu0 0.0
        %1213 = vmatprep.subr.mxu0 0.0
        %1214 = vmatpush1.xpose.msra.mxu0 0.0
        %1215 = vmatprep.subr.mxu0 0.0
        %1216 = vmatpush1.xpose.msra.mxu0 0.0
        %1217 = vmatprep.subr.mxu0 0.0
        %1218 = vmatpush1.xpose.msra.mxu0 0.0
        %1219 = vmatprep.subr.mxu0 0.0
        %1220 = vmatpush1.xpose.msra.mxu0 0.0
        %1221 = vmatprep.mubr.f32.mxu0 0.0
        %1222 = vmatmul.mubr.f32.gmra.mrb[0].mxu0 %v1152
        %v1223 = vpop.f32.mrb[0].mxu0
        %v1224 = vadd.f32 0.0, %v1223
        %v1225 = vpop.f32.mrb[0].mxu0
        %1226 = vdwg.mxu0
        %v1228 = vsel %vm705, %v996, 0
        %v1231 = vsel %vm705, %v898, 0
        %1233 = vmatprep.subr.mxu0 0.0
        %1234 = vmatpush1.xpose.msra.mxu0 %v1231
        %1235 = vmatprep.subr.mxu0 0.0
        %1236 = vmatpush1.xpose.msra.mxu0 0.0
        %1237 = vmatprep.subr.mxu0 0.0
        %1238 = vmatpush1.xpose.msra.mxu0 0.0
        %1239 = vmatprep.subr.mxu0 0.0
        %1240 = vmatpush1.xpose.msra.mxu0 0.0
        %1241 = vmatprep.subr.mxu0 0.0
        %1242 = vmatpush1.xpose.msra.mxu0 0.0
        %1243 = vmatprep.subr.mxu0 0.0
        %1244 = vmatpush1.xpose.msra.mxu0 0.0
        %1245 = vmatprep.subr.mxu0 0.0
        %1246 = vmatpush1.xpose.msra.mxu0 0.0
        %1247 = vmatprep.subr.mxu0 0.0
        %1248 = vmatpush1.xpose.msra.mxu0 0.0
        %1249 = vmatprep.subr.mxu0 0.0
        %1250 = vmatpush1.xpose.msra.mxu0 0.0
        %1251 = vmatprep.subr.mxu0 0.0
        %1252 = vmatpush1.xpose.msra.mxu0 0.0
        %1253 = vmatprep.subr.mxu0 0.0
        %1254 = vmatpush1.xpose.msra.mxu0 0.0
        %1255 = vmatprep.subr.mxu0 0.0
        %1256 = vmatpush1.xpose.msra.mxu0 0.0
        %1257 = vmatprep.subr.mxu0 0.0
        %1258 = vmatpush1.xpose.msra.mxu0 0.0
        %1259 = vmatprep.subr.mxu0 0.0
        %1260 = vmatpush1.xpose.msra.mxu0 0.0
        %1261 = vmatprep.subr.mxu0 0.0
        %1262 = vmatpush1.xpose.msra.mxu0 0.0
        %1263 = vmatprep.subr.mxu0 0.0
        %1264 = vmatpush1.xpose.msra.mxu0 0.0
        %1265 = vmatprep.subr.mxu0 0.0
        %1266 = vmatpush1.xpose.msra.mxu0 0.0
        %1267 = vmatprep.subr.mxu0 0.0
        %1268 = vmatpush1.xpose.msra.mxu0 0.0
        %1269 = vmatprep.subr.mxu0 0.0
        %1270 = vmatpush1.xpose.msra.mxu0 0.0
        %1271 = vmatprep.subr.mxu0 0.0
        %1272 = vmatpush1.xpose.msra.mxu0 0.0
        %1273 = vmatprep.subr.mxu0 0.0
        %1274 = vmatpush1.xpose.msra.mxu0 0.0
        %1275 = vmatprep.subr.mxu0 0.0
        %1276 = vmatpush1.xpose.msra.mxu0 0.0
        %1277 = vmatprep.subr.mxu0 0.0
        %1278 = vmatpush1.xpose.msra.mxu0 0.0
        %1279 = vmatprep.subr.mxu0 0.0
        %1280 = vmatpush1.xpose.msra.mxu0 0.0
        %1281 = vmatprep.subr.mxu0 0.0
        %1282 = vmatpush1.xpose.msra.mxu0 0.0
        %1283 = vmatprep.subr.mxu0 0.0
        %1284 = vmatpush1.xpose.msra.mxu0 0.0
        %1285 = vmatprep.subr.mxu0 0.0
        %1286 = vmatpush1.xpose.msra.mxu0 0.0
        %1287 = vmatprep.subr.mxu0 0.0
        %1288 = vmatpush1.xpose.msra.mxu0 0.0
        %1289 = vmatprep.subr.mxu0 0.0
        %1290 = vmatpush1.xpose.msra.mxu0 0.0
        %1291 = vmatprep.subr.mxu0 0.0
        %1292 = vmatpush1.xpose.msra.mxu0 0.0
        %1293 = vmatprep.subr.mxu0 0.0
        %1294 = vmatpush1.xpose.msra.mxu0 0.0
        %1295 = vmatprep.subr.mxu0 0.0
        %1296 = vmatpush1.xpose.msra.mxu0 0.0
        %1297 = vmatprep.mubr.f32.mxu0 0.0
        %1298 = vmatmul.mubr.f32.gmra.mrb[0].mxu0 %v1228
        %v1299 = vpop.f32.mrb[0].mxu0
        %v1300 = vadd.f32 0.0, %v1299
        %v1301 = vpop.f32.mrb[0].mxu0
        %1302 = vdwg.mxu0
        %v1303 = vld [vmem:[%s691] sm:$0xff]
        %vm1304 = vcmp.gt.f32.partialorder %v1303, 0.0
        %v1305 = vld [vmem:[%s687] sm:$0xff]
        %v1306 = vmul.f32 %v1072, %v1305
        %v1307 = vmul.f32 %v1148, %v1305
        %v1308 = vmul.f32 %v1224, %v1305
        %v1309 = vmul.f32 %v1300, %v1305
        %v1310 = vsel %vm1304, 1, 0
        %vm1311 = vcmp.eq.s32.totalorder %v1310, 1
        %v1312 = vsel %vm1311, %v1306, -1e+20
        %v1313 = vsel %vm1311, %v1307, -1e+20
        %v1314 = vsel %vm1311, %v1308, -1e+20
        %v1315 = vsel %vm1311, %v1309, -1e+20
        %v1316 = vsel %vm705, %v1312, -inf
        %1317 = vmax.xlane.f32.xlu0 %v1316
        %v1318 = vpop.xlane.xlu0 %1317
        %v1319 = vsel %vm705, %v1313, -inf
        %1320 = vmax.xlane.f32.xlu0 %v1319
        %v1321 = vpop.xlane.xlu0 %1320
        %v1322 = vsel %vm705, %v1314, -inf
        %1323 = vmax.xlane.f32.xlu0 %v1322
        %v1324 = vpop.xlane.xlu0 %1323
        %v1325 = vsel %vm705, %v1315, -inf
        %1326 = vmax.xlane.f32.xlu0 %v1325
        %v1327 = vpop.xlane.xlu0 %1326
        %v1328 = vsub.f32 %v1312, %v1318
        %v1329 = vsub.f32 %v1313, %v1321
        %v1330 = vsub.f32 %v1314, %v1324
        %v1331 = vsub.f32 %v1315, %v1327
        %v1332 = vmul.f32 %v1328, 1.442695
        %v1333 = vpow.pop %v1332
        %v1334 = vmul.f32 %v1329, 1.442695
        %v1335 = vpow.pop %v1334
        %v1336 = vmul.f32 %v1330, 1.442695
        %v1337 = vpow.pop %v1336
        %v1338 = vmul.f32 %v1331, 1.442695
        %v1339 = vpow.pop %v1338
        %v1340 = vsel %vm705, %v1333, 0.0
        %1341 = vadd.xlane.f32.xlu0 %v1340
        %v1342 = vpop.xlane.xlu0 %1341
        %v1343 = vsel %vm705, %v1335, 0.0
        %1344 = vadd.xlane.f32.xlu0 %v1343
        %v1345 = vpop.xlane.xlu0 %1344
        %v1346 = vsel %vm705, %v1337, 0.0
        %1347 = vadd.xlane.f32.xlu0 %v1346
        %v1348 = vpop.xlane.xlu0 %1347
        %v1349 = vsel %vm705, %v1339, 0.0
        %1350 = vadd.xlane.f32.xlu0 %v1349
        %v1351 = vpop.xlane.xlu0 %1350
        %v1352 = vrcp.pop %v1342
        %v1353 = vrcp.pop %v1345
        %v1354 = vrcp.pop %v1348
        %v1355 = vrcp.pop %v1351
        %v1356 = vmul.f32 %v1333, %v1352
        %v1357 = vmul.f32 %v1335, %v1353
        %v1358 = vmul.f32 %v1337, %v1354
        %v1359 = vmul.f32 %v1339, %v1355
        %v1361 = vsel %vm705, %v1356, 0
        %1363 = vmatprep.subr.mxu0 0.0
        %1364 = vmatpush1.msra.mxu0 %v785
        %1365 = vmatprep.subr.mxu0 0.0
        %1366 = vmatpush1.msra.mxu0 0.0
        %1367 = vmatprep.subr.mxu0 0.0
        %1368 = vmatpush1.msra.mxu0 0.0
        %1369 = vmatprep.subr.mxu0 0.0
        %1370 = vmatpush1.msra.mxu0 0.0
        %1371 = vmatprep.subr.mxu0 0.0
        %1372 = vmatpush1.msra.mxu0 0.0
        %1373 = vmatprep.subr.mxu0 0.0
        %1374 = vmatpush1.msra.mxu0 0.0
        %1375 = vmatprep.subr.mxu0 0.0
        %1376 = vmatpush1.msra.mxu0 0.0
        %1377 = vmatprep.subr.mxu0 0.0
        %1378 = vmatpush1.msra.mxu0 0.0
        %1379 = vmatprep.subr.mxu0 0.0
        %1380 = vmatpush1.msra.mxu0 0.0
        %1381 = vmatprep.subr.mxu0 0.0
        %1382 = vmatpush1.msra.mxu0 0.0
        %1383 = vmatprep.subr.mxu0 0.0
        %1384 = vmatpush1.msra.mxu0 0.0
        %1385 = vmatprep.subr.mxu0 0.0
        %1386 = vmatpush1.msra.mxu0 0.0
        %1387 = vmatprep.subr.mxu0 0.0
        %1388 = vmatpush1.msra.mxu0 0.0
        %1389 = vmatprep.subr.mxu0 0.0
        %1390 = vmatpush1.msra.mxu0 0.0
        %1391 = vmatprep.subr.mxu0 0.0
        %1392 = vmatpush1.msra.mxu0 0.0
        %1393 = vmatprep.subr.mxu0 0.0
        %1394 = vmatpush1.msra.mxu0 0.0
        %1395 = vmatprep.subr.mxu0 0.0
        %1396 = vmatpush1.msra.mxu0 0.0
        %1397 = vmatprep.subr.mxu0 0.0
        %1398 = vmatpush1.msra.mxu0 0.0
        %1399 = vmatprep.subr.mxu0 0.0
        %1400 = vmatpush1.msra.mxu0 0.0
        %1401 = vmatprep.subr.mxu0 0.0
        %1402 = vmatpush1.msra.mxu0 0.0
        %1403 = vmatprep.subr.mxu0 0.0
        %1404 = vmatpush1.msra.mxu0 0.0
        %1405 = vmatprep.subr.mxu0 0.0
        %1406 = vmatpush1.msra.mxu0 0.0
        %1407 = vmatprep.subr.mxu0 0.0
        %1408 = vmatpush1.msra.mxu0 0.0
        %1409 = vmatprep.subr.mxu0 0.0
        %1410 = vmatpush1.msra.mxu0 0.0
        %1411 = vmatprep.subr.mxu0 0.0
        %1412 = vmatpush1.msra.mxu0 0.0
        %1413 = vmatprep.subr.mxu0 0.0
        %1414 = vmatpush1.msra.mxu0 0.0
        %1415 = vmatprep.subr.mxu0 0.0
        %1416 = vmatpush1.msra.mxu0 0.0
        %1417 = vmatprep.subr.mxu0 0.0
        %1418 = vmatpush1.msra.mxu0 0.0
        %1419 = vmatprep.subr.mxu0 0.0
        %1420 = vmatpush1.msra.mxu0 0.0
        %1421 = vmatprep.subr.mxu0 0.0
        %1422 = vmatpush1.msra.mxu0 0.0
        %1423 = vmatprep.subr.mxu0 0.0
        %1424 = vmatpush1.msra.mxu0 0.0
        %1425 = vmatprep.subr.mxu0 0.0
        %1426 = vmatpush1.msra.mxu0 0.0
        %1427 = vmatprep.mubr.f32.mxu0 0.0
        %1428 = vmatmul.mubr.f32.gmra.mrb[0].mxu0 %v1361
        %v1429 = vpop.f32.mrb[0].mxu0
        %v1430 = vadd.f32 0.0, %v1429
        %v1431 = vpop.f32.mrb[0].mxu0
        %1432 = vdwg.mxu0
        %v1434 = vsel %vm705, %v1357, 0
        %1436 = vmatprep.subr.mxu0 0.0
        %1437 = vmatpush1.msra.mxu0 %v790
        %1438 = vmatprep.subr.mxu0 0.0
        %1439 = vmatpush1.msra.mxu0 0.0
        %1440 = vmatprep.subr.mxu0 0.0
        %1441 = vmatpush1.msra.mxu0 0.0
        %1442 = vmatprep.subr.mxu0 0.0
        %1443 = vmatpush1.msra.mxu0 0.0
        %1444 = vmatprep.subr.mxu0 0.0
        %1445 = vmatpush1.msra.mxu0 0.0
        %1446 = vmatprep.subr.mxu0 0.0
        %1447 = vmatpush1.msra.mxu0 0.0
        %1448 = vmatprep.subr.mxu0 0.0
        %1449 = vmatpush1.msra.mxu0 0.0
        %1450 = vmatprep.subr.mxu0 0.0
        %1451 = vmatpush1.msra.mxu0 0.0
        %1452 = vmatprep.subr.mxu0 0.0
        %1453 = vmatpush1.msra.mxu0 0.0
        %1454 = vmatprep.subr.mxu0 0.0
        %1455 = vmatpush1.msra.mxu0 0.0
        %1456 = vmatprep.subr.mxu0 0.0
        %1457 = vmatpush1.msra.mxu0 0.0
        %1458 = vmatprep.subr.mxu0 0.0
        %1459 = vmatpush1.msra.mxu0 0.0
        %1460 = vmatprep.subr.mxu0 0.0
        %1461 = vmatpush1.msra.mxu0 0.0
        %1462 = vmatprep.subr.mxu0 0.0
        %1463 = vmatpush1.msra.mxu0 0.0
        %1464 = vmatprep.subr.mxu0 0.0
        %1465 = vmatpush1.msra.mxu0 0.0
        %1466 = vmatprep.subr.mxu0 0.0
        %1467 = vmatpush1.msra.mxu0 0.0
        %1468 = vmatprep.subr.mxu0 0.0
        %1469 = vmatpush1.msra.mxu0 0.0
        %1470 = vmatprep.subr.mxu0 0.0
        %1471 = vmatpush1.msra.mxu0 0.0
        %1472 = vmatprep.subr.mxu0 0.0
        %1473 = vmatpush1.msra.mxu0 0.0
        %1474 = vmatprep.subr.mxu0 0.0
        %1475 = vmatpush1.msra.mxu0 0.0
        %1476 = vmatprep.subr.mxu0 0.0
        %1477 = vmatpush1.msra.mxu0 0.0
        %1478 = vmatprep.subr.mxu0 0.0
        %1479 = vmatpush1.msra.mxu0 0.0
        %1480 = vmatprep.subr.mxu0 0.0
        %1481 = vmatpush1.msra.mxu0 0.0
        %1482 = vmatprep.subr.mxu0 0.0
        %1483 = vmatpush1.msra.mxu0 0.0
        %1484 = vmatprep.subr.mxu0 0.0
        %1485 = vmatpush1.msra.mxu0 0.0
        %1486 = vmatprep.subr.mxu0 0.0
        %1487 = vmatpush1.msra.mxu0 0.0
        %1488 = vmatprep.subr.mxu0 0.0
        %1489 = vmatpush1.msra.mxu0 0.0
        %1490 = vmatprep.subr.mxu0 0.0
        %1491 = vmatpush1.msra.mxu0 0.0
        %1492 = vmatprep.subr.mxu0 0.0
        %1493 = vmatpush1.msra.mxu0 0.0
        %1494 = vmatprep.subr.mxu0 0.0
        %1495 = vmatpush1.msra.mxu0 0.0
        %1496 = vmatprep.subr.mxu0 0.0
        %1497 = vmatpush1.msra.mxu0 0.0
        %1498 = vmatprep.subr.mxu0 0.0
        %1499 = vmatpush1.msra.mxu0 0.0
        %1500 = vmatprep.mubr.f32.mxu0 0.0
        %1501 = vmatmul.mubr.f32.gmra.mrb[0].mxu0 %v1434
        %v1502 = vpop.f32.mrb[0].mxu0
        %v1503 = vadd.f32 0.0, %v1502
        %v1504 = vpop.f32.mrb[0].mxu0
        %1505 = vdwg.mxu0
        %v1507 = vsel %vm705, %v1358, 0
        %1509 = vmatprep.subr.mxu0 0.0
        %1510 = vmatpush1.msra.mxu0 %v795
        %1511 = vmatprep.subr.mxu0 0.0
        %1512 = vmatpush1.msra.mxu0 0.0
        %1513 = vmatprep.subr.mxu0 0.0
        %1514 = vmatpush1.msra.mxu0 0.0
        %1515 = vmatprep.subr.mxu0 0.0
        %1516 = vmatpush1.msra.mxu0 0.0
        %1517 = vmatprep.subr.mxu0 0.0
        %1518 = vmatpush1.msra.mxu0 0.0
        %1519 = vmatprep.subr.mxu0 0.0
        %1520 = vmatpush1.msra.mxu0 0.0
        %1521 = vmatprep.subr.mxu0 0.0
        %1522 = vmatpush1.msra.mxu0 0.0
        %1523 = vmatprep.subr.mxu0 0.0
        %1524 = vmatpush1.msra.mxu0 0.0
        %1525 = vmatprep.subr.mxu0 0.0
        %1526 = vmatpush1.msra.mxu0 0.0
        %1527 = vmatprep.subr.mxu0 0.0
        %1528 = vmatpush1.msra.mxu0 0.0
        %1529 = vmatprep.subr.mxu0 0.0
        %1530 = vmatpush1.msra.mxu0 0.0
        %1531 = vmatprep.subr.mxu0 0.0
        %1532 = vmatpush1.msra.mxu0 0.0
        %1533 = vmatprep.subr.mxu0 0.0
        %1534 = vmatpush1.msra.mxu0 0.0
        %1535 = vmatprep.subr.mxu0 0.0
        %1536 = vmatpush1.msra.mxu0 0.0
        %1537 = vmatprep.subr.mxu0 0.0
        %1538 = vmatpush1.msra.mxu0 0.0
        %1539 = vmatprep.subr.mxu0 0.0
        %1540 = vmatpush1.msra.mxu0 0.0
        %1541 = vmatprep.subr.mxu0 0.0
        %1542 = vmatpush1.msra.mxu0 0.0
        %1543 = vmatprep.subr.mxu0 0.0
        %1544 = vmatpush1.msra.mxu0 0.0
        %1545 = vmatprep.subr.mxu0 0.0
        %1546 = vmatpush1.msra.mxu0 0.0
        %1547 = vmatprep.subr.mxu0 0.0
        %1548 = vmatpush1.msra.mxu0 0.0
        %1549 = vmatprep.subr.mxu0 0.0
        %1550 = vmatpush1.msra.mxu0 0.0
        %1551 = vmatprep.subr.mxu0 0.0
        %1552 = vmatpush1.msra.mxu0 0.0
        %1553 = vmatprep.subr.mxu0 0.0
        %1554 = vmatpush1.msra.mxu0 0.0
        %1555 = vmatprep.subr.mxu0 0.0
        %1556 = vmatpush1.msra.mxu0 0.0
        %1557 = vmatprep.subr.mxu0 0.0
        %1558 = vmatpush1.msra.mxu0 0.0
        %1559 = vmatprep.subr.mxu0 0.0
        %1560 = vmatpush1.msra.mxu0 0.0
        %1561 = vmatprep.subr.mxu0 0.0
        %1562 = vmatpush1.msra.mxu0 0.0
        %1563 = vmatprep.subr.mxu0 0.0
        %1564 = vmatpush1.msra.mxu0 0.0
        %1565 = vmatprep.subr.mxu0 0.0
        %1566 = vmatpush1.msra.mxu0 0.0
        %1567 = vmatprep.subr.mxu0 0.0
        %1568 = vmatpush1.msra.mxu0 0.0
        %1569 = vmatprep.subr.mxu0 0.0
        %1570 = vmatpush1.msra.mxu0 0.0
        %1571 = vmatprep.subr.mxu0 0.0
        %1572 = vmatpush1.msra.mxu0 0.0
        %1573 = vmatprep.mubr.f32.mxu0 0.0
        %1574 = vmatmul.mubr.f32.gmra.mrb[0].mxu0 %v1507
        %v1575 = vpop.f32.mrb[0].mxu0
        %v1576 = vadd.f32 0.0, %v1575
        %v1577 = vpop.f32.mrb[0].mxu0
        %1578 = vdwg.mxu0
        %v1580 = vsel %vm705, %v1359, 0
        %1582 = vmatprep.subr.mxu0 0.0
        %1583 = vmatpush1.msra.mxu0 %v800
        %1584 = vmatprep.subr.mxu0 0.0
        %1585 = vmatpush1.msra.mxu0 0.0
        %1586 = vmatprep.subr.mxu0 0.0
        %1587 = vmatpush1.msra.mxu0 0.0
        %1588 = vmatprep.subr.mxu0 0.0
        %1589 = vmatpush1.msra.mxu0 0.0
        %1590 = vmatprep.subr.mxu0 0.0
        %1591 = vmatpush1.msra.mxu0 0.0
        %1592 = vmatprep.subr.mxu0 0.0
        %1593 = vmatpush1.msra.mxu0 0.0
        %1594 = vmatprep.subr.mxu0 0.0
        %1595 = vmatpush1.msra.mxu0 0.0
        %1596 = vmatprep.subr.mxu0 0.0
        %1597 = vmatpush1.msra.mxu0 0.0
        %1598 = vmatprep.subr.mxu0 0.0
        %1599 = vmatpush1.msra.mxu0 0.0
        %1600 = vmatprep.subr.mxu0 0.0
        %1601 = vmatpush1.msra.mxu0 0.0
        %1602 = vmatprep.subr.mxu0 0.0
        %1603 = vmatpush1.msra.mxu0 0.0
        %1604 = vmatprep.subr.mxu0 0.0
        %1605 = vmatpush1.msra.mxu0 0.0
        %1606 = vmatprep.subr.mxu0 0.0
        %1607 = vmatpush1.msra.mxu0 0.0
        %1608 = vmatprep.subr.mxu0 0.0
        %1609 = vmatpush1.msra.mxu0 0.0
        %1610 = vmatprep.subr.mxu0 0.0
        %1611 = vmatpush1.msra.mxu0 0.0
        %1612 = vmatprep.subr.mxu0 0.0
        %1613 = vmatpush1.msra.mxu0 0.0
        %1614 = vmatprep.subr.mxu0 0.0
        %1615 = vmatpush1.msra.mxu0 0.0
        %1616 = vmatprep.subr.mxu0 0.0
        %1617 = vmatpush1.msra.mxu0 0.0
        %1618 = vmatprep.subr.mxu0 0.0
        %1619 = vmatpush1.msra.mxu0 0.0
        %1620 = vmatprep.subr.mxu0 0.0
        %1621 = vmatpush1.msra.mxu0 0.0
        %1622 = vmatprep.subr.mxu0 0.0
        %1623 = vmatpush1.msra.mxu0 0.0
        %1624 = vmatprep.subr.mxu0 0.0
        %1625 = vmatpush1.msra.mxu0 0.0
        %1626 = vmatprep.subr.mxu0 0.0
        %1627 = vmatpush1.msra.mxu0 0.0
        %1628 = vmatprep.subr.mxu0 0.0
        %1629 = vmatpush1.msra.mxu0 0.0
        %1630 = vmatprep.subr.mxu0 0.0
        %1631 = vmatpush1.msra.mxu0 0.0
        %1632 = vmatprep.subr.mxu0 0.0
        %1633 = vmatpush1.msra.mxu0 0.0
        %1634 = vmatprep.subr.mxu0 0.0
        %1635 = vmatpush1.msra.mxu0 0.0
        %1636 = vmatprep.subr.mxu0 0.0
        %1637 = vmatpush1.msra.mxu0 0.0
        %1638 = vmatprep.subr.mxu0 0.0
        %1639 = vmatpush1.msra.mxu0 0.0
        %1640 = vmatprep.subr.mxu0 0.0
        %1641 = vmatpush1.msra.mxu0 0.0
        %1642 = vmatprep.subr.mxu0 0.0
        %1643 = vmatpush1.msra.mxu0 0.0
        %1644 = vmatprep.subr.mxu0 0.0
        %1645 = vmatpush1.msra.mxu0 0.0
        %1646 = vmatprep.mubr.f32.mxu0 0.0
        %1647 = vmatmul.mubr.f32.gmra.mrb[0].mxu0 %v1580
        %v1648 = vpop.f32.mrb[0].mxu0
        %v1649 = vadd.f32 0.0, %v1648
        %v1650 = vpop.f32.mrb[0].mxu0
        %1651 = vdwg.mxu0
        %v1652 = vld [vmem:[%s9] sm:$0xff]
        %s1653 = scalar_lea.vmem %s9, 8
        %v1654 = vld [vmem:[%s1653] sm:$0xff]
        %v1656 = vsel %vm705, %v1503, 0
        %1658 = vmatprep.subr.mxu0 0.0
        %1659 = vmatpush1.msra.mxu0 %v1654
        %1660 = vmatprep.subr.mxu0 0.0
        %1661 = vmatpush1.msra.mxu0 0.0
        %1662 = vmatprep.subr.mxu0 0.0
        %1663 = vmatpush1.msra.mxu0 0.0
        %1664 = vmatprep.subr.mxu0 0.0
        %1665 = vmatpush1.msra.mxu0 0.0
        %1666 = vmatprep.subr.mxu0 0.0
        %1667 = vmatpush1.msra.mxu0 0.0
        %1668 = vmatprep.subr.mxu0 0.0
        %1669 = vmatpush1.msra.mxu0 0.0
        %1670 = vmatprep.subr.mxu0 0.0
        %1671 = vmatpush1.msra.mxu0 0.0
        %1672 = vmatprep.subr.mxu0 0.0
        %1673 = vmatpush1.msra.mxu0 0.0
        %1674 = vmatprep.subr.mxu0 0.0
        %1675 = vmatpush1.msra.mxu0 0.0
        %1676 = vmatprep.subr.mxu0 0.0
        %1677 = vmatpush1.msra.mxu0 0.0
        %1678 = vmatprep.subr.mxu0 0.0
        %1679 = vmatpush1.msra.mxu0 0.0
        %1680 = vmatprep.subr.mxu0 0.0
        %1681 = vmatpush1.msra.mxu0 0.0
        %1682 = vmatprep.subr.mxu0 0.0
        %1683 = vmatpush1.msra.mxu0 0.0
        %1684 = vmatprep.subr.mxu0 0.0
        %1685 = vmatpush1.msra.mxu0 0.0
        %1686 = vmatprep.subr.mxu0 0.0
        %1687 = vmatpush1.msra.mxu0 0.0
        %1688 = vmatprep.subr.mxu0 0.0
        %1689 = vmatpush1.msra.mxu0 0.0
        %1690 = vmatprep.subr.mxu0 0.0
        %1691 = vmatpush1.msra.mxu0 0.0
        %1692 = vmatprep.subr.mxu0 0.0
        %1693 = vmatpush1.msra.mxu0 0.0
        %1694 = vmatprep.subr.mxu0 0.0
        %1695 = vmatpush1.msra.mxu0 0.0
        %1696 = vmatprep.subr.mxu0 0.0
        %1697 = vmatpush1.msra.mxu0 0.0
        %1698 = vmatprep.subr.mxu0 0.0
        %1699 = vmatpush1.msra.mxu0 0.0
        %1700 = vmatprep.subr.mxu0 0.0
        %1701 = vmatpush1.msra.mxu0 0.0
        %1702 = vmatprep.subr.mxu0 0.0
        %1703 = vmatpush1.msra.mxu0 0.0
        %1704 = vmatprep.subr.mxu0 0.0
        %1705 = vmatpush1.msra.mxu0 0.0
        %1706 = vmatprep.subr.mxu0 0.0
        %1707 = vmatpush1.msra.mxu0 0.0
        %1708 = vmatprep.subr.mxu0 0.0
        %1709 = vmatpush1.msra.mxu0 0.0
        %1710 = vmatprep.subr.mxu0 0.0
        %1711 = vmatpush1.msra.mxu0 0.0
        %1712 = vmatprep.subr.mxu0 0.0
        %1713 = vmatpush1.msra.mxu0 0.0
        %1714 = vmatprep.subr.mxu0 0.0
        %1715 = vmatpush1.msra.mxu0 0.0
        %1716 = vmatprep.subr.mxu0 0.0
        %1717 = vmatpush1.msra.mxu0 0.0
        %1718 = vmatprep.subr.mxu0 0.0
        %1719 = vmatpush1.msra.mxu0 0.0
        %1720 = vmatprep.subr.mxu0 0.0
        %1721 = vmatpush1.msra.mxu0 0.0
        %1722 = vmatprep.mubr.f32.mxu0 0.0
        %1723 = vmatmul.mubr.f32.gmra.mrb[0].mxu0 %v1656
        %v1724 = vpop.f32.mrb[0].mxu0
        %v1725 = vadd.f32 0.0, %v1724
        %v1726 = vpop.f32.mrb[0].mxu0
        %1727 = vdwg.mxu0
        %v1729 = vsel %vm705, %v1430, 0
        %1731 = vmatprep.subr.mxu0 0.0
        %1732 = vmatpush1.msra.mxu0 %v1652
        %1733 = vmatprep.subr.mxu0 0.0
        %1734 = vmatpush1.msra.mxu0 0.0
        %1735 = vmatprep.subr.mxu0 0.0
        %1736 = vmatpush1.msra.mxu0 0.0
        %1737 = vmatprep.subr.mxu0 0.0
        %1738 = vmatpush1.msra.mxu0 0.0
        %1739 = vmatprep.subr.mxu0 0.0
        %1740 = vmatpush1.msra.mxu0 0.0
        %1741 = vmatprep.subr.mxu0 0.0
        %1742 = vmatpush1.msra.mxu0 0.0
        %1743 = vmatprep.subr.mxu0 0.0
        %1744 = vmatpush1.msra.mxu0 0.0
        %1745 = vmatprep.subr.mxu0 0.0
        %1746 = vmatpush1.msra.mxu0 0.0
        %1747 = vmatprep.subr.mxu0 0.0
        %1748 = vmatpush1.msra.mxu0 0.0
        %1749 = vmatprep.subr.mxu0 0.0
        %1750 = vmatpush1.msra.mxu0 0.0
        %1751 = vmatprep.subr.mxu0 0.0
        %1752 = vmatpush1.msra.mxu0 0.0
        %1753 = vmatprep.subr.mxu0 0.0
        %1754 = vmatpush1.msra.mxu0 0.0
        %1755 = vmatprep.subr.mxu0 0.0
        %1756 = vmatpush1.msra.mxu0 0.0
        %1757 = vmatprep.subr.mxu0 0.0
        %1758 = vmatpush1.msra.mxu0 0.0
        %1759 = vmatprep.subr.mxu0 0.0
        %1760 = vmatpush1.msra.mxu0 0.0
        %1761 = vmatprep.subr.mxu0 0.0
        %1762 = vmatpush1.msra.mxu0 0.0
        %1763 = vmatprep.subr.mxu0 0.0
        %1764 = vmatpush1.msra.mxu0 0.0
        %1765 = vmatprep.subr.mxu0 0.0
        %1766 = vmatpush1.msra.mxu0 0.0
        %1767 = vmatprep.subr.mxu0 0.0
        %1768 = vmatpush1.msra.mxu0 0.0
        %1769 = vmatprep.subr.mxu0 0.0
        %1770 = vmatpush1.msra.mxu0 0.0
        %1771 = vmatprep.subr.mxu0 0.0
        %1772 = vmatpush1.msra.mxu0 0.0
        %1773 = vmatprep.subr.mxu0 0.0
        %1774 = vmatpush1.msra.mxu0 0.0
        %1775 = vmatprep.subr.mxu0 0.0
        %1776 = vmatpush1.msra.mxu0 0.0
        %1777 = vmatprep.subr.mxu0 0.0
        %1778 = vmatpush1.msra.mxu0 0.0
        %1779 = vmatprep.subr.mxu0 0.0
        %1780 = vmatpush1.msra.mxu0 0.0
        %1781 = vmatprep.subr.mxu0 0.0
        %1782 = vmatpush1.msra.mxu0 0.0
        %1783 = vmatprep.subr.mxu0 0.0
        %1784 = vmatpush1.msra.mxu0 0.0
        %1785 = vmatprep.subr.mxu0 0.0
        %1786 = vmatpush1.msra.mxu0 0.0
        %1787 = vmatprep.subr.mxu0 0.0
        %1788 = vmatpush1.msra.mxu0 0.0
        %1789 = vmatprep.subr.mxu0 0.0
        %1790 = vmatpush1.msra.mxu0 0.0
        %1791 = vmatprep.subr.mxu0 0.0
        %1792 = vmatpush1.msra.mxu0 0.0
        %1793 = vmatprep.subr.mxu0 0.0
        %1794 = vmatpush1.msra.mxu0 0.0
        %1795 = vmatprep.mubr.f32.mxu0 0.0
        %1796 = vmatmul.mubr.f32.gmra.mrb[0].mxu0 %v1729
        %v1797 = vpop.f32.mrb[0].mxu0
        %v1798 = vadd.f32 %v1725, %v1797
        %v1799 = vpop.f32.mrb[0].mxu0
        %1800 = vdwg.mxu0
        %s1801 = scalar_lea.vmem %s9, 16
        %v1802 = vld [vmem:[%s1801] sm:$0xff]
        %v1804 = vsel %vm705, %v1576, 0
        %1806 = vmatprep.subr.mxu0 0.0
        %1807 = vmatpush1.msra.mxu0 %v1802
        %1808 = vmatprep.subr.mxu0 0.0
        %1809 = vmatpush1.msra.mxu0 0.0
        %1810 = vmatprep.subr.mxu0 0.0
        %1811 = vmatpush1.msra.mxu0 0.0
        %1812 = vmatprep.subr.mxu0 0.0
        %1813 = vmatpush1.msra.mxu0 0.0
        %1814 = vmatprep.subr.mxu0 0.0
        %1815 = vmatpush1.msra.mxu0 0.0
        %1816 = vmatprep.subr.mxu0 0.0
        %1817 = vmatpush1.msra.mxu0 0.0
        %1818 = vmatprep.subr.mxu0 0.0
        %1819 = vmatpush1.msra.mxu0 0.0
        %1820 = vmatprep.subr.mxu0 0.0
        %1821 = vmatpush1.msra.mxu0 0.0
        %1822 = vmatprep.subr.mxu0 0.0
        %1823 = vmatpush1.msra.mxu0 0.0
        %1824 = vmatprep.subr.mxu0 0.0
        %1825 = vmatpush1.msra.mxu0 0.0
        %1826 = vmatprep.subr.mxu0 0.0
        %1827 = vmatpush1.msra.mxu0 0.0
        %1828 = vmatprep.subr.mxu0 0.0
        %1829 = vmatpush1.msra.mxu0 0.0
        %1830 = vmatprep.subr.mxu0 0.0
        %1831 = vmatpush1.msra.mxu0 0.0
        %1832 = vmatprep.subr.mxu0 0.0
        %1833 = vmatpush1.msra.mxu0 0.0
        %1834 = vmatprep.subr.mxu0 0.0
        %1835 = vmatpush1.msra.mxu0 0.0
        %1836 = vmatprep.subr.mxu0 0.0
        %1837 = vmatpush1.msra.mxu0 0.0
        %1838 = vmatprep.subr.mxu0 0.0
        %1839 = vmatpush1.msra.mxu0 0.0
        %1840 = vmatprep.subr.mxu0 0.0
        %1841 = vmatpush1.msra.mxu0 0.0
        %1842 = vmatprep.subr.mxu0 0.0
        %1843 = vmatpush1.msra.mxu0 0.0
        %1844 = vmatprep.subr.mxu0 0.0
        %1845 = vmatpush1.msra.mxu0 0.0
        %1846 = vmatprep.subr.mxu0 0.0
        %1847 = vmatpush1.msra.mxu0 0.0
        %1848 = vmatprep.subr.mxu0 0.0
        %1849 = vmatpush1.msra.mxu0 0.0
        %1850 = vmatprep.subr.mxu0 0.0
        %1851 = vmatpush1.msra.mxu0 0.0
        %1852 = vmatprep.subr.mxu0 0.0
        %1853 = vmatpush1.msra.mxu0 0.0
        %1854 = vmatprep.subr.mxu0 0.0
        %1855 = vmatpush1.msra.mxu0 0.0
        %1856 = vmatprep.subr.mxu0 0.0
        %1857 = vmatpush1.msra.mxu0 0.0
        %1858 = vmatprep.subr.mxu0 0.0
        %1859 = vmatpush1.msra.mxu0 0.0
        %1860 = vmatprep.subr.mxu0 0.0
        %1861 = vmatpush1.msra.mxu0 0.0
        %1862 = vmatprep.subr.mxu0 0.0
        %1863 = vmatpush1.msra.mxu0 0.0
        %1864 = vmatprep.subr.mxu0 0.0
        %1865 = vmatpush1.msra.mxu0 0.0
        %1866 = vmatprep.subr.mxu0 0.0
        %1867 = vmatpush1.msra.mxu0 0.0
        %1868 = vmatprep.subr.mxu0 0.0
        %1869 = vmatpush1.msra.mxu0 0.0
        %1870 = vmatprep.mubr.f32.mxu0 0.0
        %1871 = vmatmul.mubr.f32.gmra.mrb[0].mxu0 %v1804
        %v1872 = vpop.f32.mrb[0].mxu0
        %v1873 = vadd.f32 0.0, %v1872
        %v1874 = vpop.f32.mrb[0].mxu0
        %1875 = vdwg.mxu0
        %v1876 = vadd.f32 %v1798, %v1873
        %s1877 = scalar_lea.vmem %s9, 24
        %v1878 = vld [vmem:[%s1877] sm:$0xff]
        %v1880 = vsel %vm705, %v1649, 0
        %1882 = vmatprep.subr.mxu0 0.0
        %1883 = vmatpush1.msra.mxu0 %v1878
        %1884 = vmatprep.subr.mxu0 0.0
        %1885 = vmatpush1.msra.mxu0 0.0
        %1886 = vmatprep.subr.mxu0 0.0
        %1887 = vmatpush1.msra.mxu0 0.0
        %1888 = vmatprep.subr.mxu0 0.0
        %1889 = vmatpush1.msra.mxu0 0.0
        %1890 = vmatprep.subr.mxu0 0.0
        %1891 = vmatpush1.msra.mxu0 0.0
        %1892 = vmatprep.subr.mxu0 0.0
        %1893 = vmatpush1.msra.mxu0 0.0
        %1894 = vmatprep.subr.mxu0 0.0
        %1895 = vmatpush1.msra.mxu0 0.0
        %1896 = vmatprep.subr.mxu0 0.0
        %1897 = vmatpush1.msra.mxu0 0.0
        %1898 = vmatprep.subr.mxu0 0.0
        %1899 = vmatpush1.msra.mxu0 0.0
        %1900 = vmatprep.subr.mxu0 0.0
        %1901 = vmatpush1.msra.mxu0 0.0
        %1902 = vmatprep.subr.mxu0 0.0
        %1903 = vmatpush1.msra.mxu0 0.0
        %1904 = vmatprep.subr.mxu0 0.0
        %1905 = vmatpush1.msra.mxu0 0.0
        %1906 = vmatprep.subr.mxu0 0.0
        %1907 = vmatpush1.msra.mxu0 0.0
        %1908 = vmatprep.subr.mxu0 0.0
        %1909 = vmatpush1.msra.mxu0 0.0
        %1910 = vmatprep.subr.mxu0 0.0
        %1911 = vmatpush1.msra.mxu0 0.0
        %1912 = vmatprep.subr.mxu0 0.0
        %1913 = vmatpush1.msra.mxu0 0.0
        %1914 = vmatprep.subr.mxu0 0.0
        %1915 = vmatpush1.msra.mxu0 0.0
        %1916 = vmatprep.subr.mxu0 0.0
        %1917 = vmatpush1.msra.mxu0 0.0
        %1918 = vmatprep.subr.mxu0 0.0
        %1919 = vmatpush1.msra.mxu0 0.0
        %1920 = vmatprep.subr.mxu0 0.0
        %1921 = vmatpush1.msra.mxu0 0.0
        %1922 = vmatprep.subr.mxu0 0.0
        %1923 = vmatpush1.msra.mxu0 0.0
        %1924 = vmatprep.subr.mxu0 0.0
        %1925 = vmatpush1.msra.mxu0 0.0
        %1926 = vmatprep.subr.mxu0 0.0
        %1927 = vmatpush1.msra.mxu0 0.0
        %1928 = vmatprep.subr.mxu0 0.0
        %1929 = vmatpush1.msra.mxu0 0.0
        %1930 = vmatprep.subr.mxu0 0.0
        %1931 = vmatpush1.msra.mxu0 0.0
        %1932 = vmatprep.subr.mxu0 0.0
        %1933 = vmatpush1.msra.mxu0 0.0
        %1934 = vmatprep.subr.mxu0 0.0
        %1935 = vmatpush1.msra.mxu0 0.0
        %1936 = vmatprep.subr.mxu0 0.0
        %1937 = vmatpush1.msra.mxu0 0.0
        %1938 = vmatprep.subr.mxu0 0.0
        %1939 = vmatpush1.msra.mxu0 0.0
        %1940 = vmatprep.subr.mxu0 0.0
        %1941 = vmatpush1.msra.mxu0 0.0
        %1942 = vmatprep.subr.mxu0 0.0
        %1943 = vmatpush1.msra.mxu0 0.0
        %1944 = vmatprep.subr.mxu0 0.0
        %1945 = vmatpush1.msra.mxu0 0.0
        %1946 = vmatprep.mubr.f32.mxu0 0.0
        %1947 = vmatmul.mubr.f32.gmra.mrb[0].mxu0 %v1880
        %v1948 = vpop.f32.mrb[0].mxu0
        %v1949 = vadd.f32 0.0, %v1948
        %v1950 = vpop.f32.mrb[0].mxu0
        %1951 = vdwg.mxu0
        %v1952 = vadd.f32 %v1876, %v1949
        %v1953 = vld [vmem:[%s10] sm:$0x1]
        %v1955 = vlaneseq
        %v1956 = vshrl.u32 %v1955, 7
        %v1957 = vsub.s32 0, %v1956
        %v1958 = vrot.slane %v1953, %v1957
        %v1960 = vadd.f32 %v1952, %v1958
        %v1961 = vld [vmem:[%s683] sm:$0xff]
        %v1962 = vadd.f32 %v1960, %v1961
        %vm1963 = vcmask 261120
        %v1964 = vsel %vm1963, %v1962, 0.0
        %1965 = vadd.xlane.f32.xlu0 %v1964
        %v1966 = vpop.xlane.xlu0 %1965
        %v1967 = vrcp.pop 32.0
        %v1968 = vmul.f32 %v1966, %v1967
        %v1969 = vsub.f32 %v1962, %v1968
        %v1970 = vmul.f32 %v1969, %v1969
        %v1971 = vsel %vm1963, %v1970, 0.0
        %1972 = vadd.xlane.f32.xlu0 %v1971
        %v1973 = vpop.xlane.xlu0 %1972
        %v1974 = vmul.f32 %v1973, %v1967
        %v1975 = vadd.f32 %v1974, 1e-05
        %v1976 = vrsqrt.pop %v1975
        %v1977 = vmul.f32 %v1969, %v1976
        %v1978 = vld [vmem:[%s11] sm:$0x1]
        %v1980 = vlaneseq
        %v1981 = vshrl.u32 %v1980, 7
        %v1982 = vsub.s32 0, %v1981
        %v1983 = vrot.slane %v1978, %v1982
        %v1985 = vmul.f32 %v1977, %v1983
        %v1986 = vld [vmem:[%s12] sm:$0x1]
        %v1988 = vlaneseq
        %v1989 = vshrl.u32 %v1988, 7
        %v1990 = vsub.s32 0, %v1989
        %v1991 = vrot.slane %v1986, %v1990
        %v1993 = vadd.f32 %v1985, %v1991
        %v1994 = vld [vmem:[%s15] sm:$0xff]
        %v1995 = vld [vmem:[%s15 + $0x8] sm:$0xff]
        %v1996 = vld [vmem:[%s15 + $0x10] sm:$0xff]
        %v1997 = vld [vmem:[%s15 + $0x18] sm:$0xff]
        %v1998 = vld [vmem:[%s16] sm:$0x1]
        %v2000 = vlaneseq
        %v2001 = vshrl.u32 %v2000, 7
        %v2002 = vsub.s32 0, %v2001
        %v2003 = vrot.slane %v1998, %v2002
        %v2006 = vsel %vm1963, %v1993, 0
        %2008 = vmatprep.subr.mxu0 0.0
        %2009 = vmatpush1.msra.mxu0 %v1994
        %2010 = vmatprep.subr.mxu0 0.0
        %2011 = vmatpush1.msra.mxu0 %v1995
        %2012 = vmatprep.subr.mxu0 0.0
        %2013 = vmatpush1.msra.mxu0 %v1996
        %2014 = vmatprep.subr.mxu0 0.0
        %2015 = vmatpush1.msra.mxu0 %v1997
        %2016 = vmatprep.subr.mxu0 0.0
        %2017 = vmatpush1.msra.mxu0 0.0
        %2018 = vmatprep.subr.mxu0 0.0
        %2019 = vmatpush1.msra.mxu0 0.0
        %2020 = vmatprep.subr.mxu0 0.0
        %2021 = vmatpush1.msra.mxu0 0.0
        %2022 = vmatprep.subr.mxu0 0.0
        %2023 = vmatpush1.msra.mxu0 0.0
        %2024 = vmatprep.subr.mxu0 0.0
        %2025 = vmatpush1.msra.mxu0 0.0
        %2026 = vmatprep.subr.mxu0 0.0
        %2027 = vmatpush1.msra.mxu0 0.0
        %2028 = vmatprep.subr.mxu0 0.0
        %2029 = vmatpush1.msra.mxu0 0.0
        %2030 = vmatprep.subr.mxu0 0.0
        %2031 = vmatpush1.msra.mxu0 0.0
        %2032 = vmatprep.subr.mxu0 0.0
        %2033 = vmatpush1.msra.mxu0 0.0
        %2034 = vmatprep.subr.mxu0 0.0
        %2035 = vmatpush1.msra.mxu0 0.0
        %2036 = vmatprep.subr.mxu0 0.0
        %2037 = vmatpush1.msra.mxu0 0.0
        %2038 = vmatprep.subr.mxu0 0.0
        %2039 = vmatpush1.msra.mxu0 0.0
        %2040 = vmatprep.subr.mxu0 0.0
        %2041 = vmatpush1.msra.mxu0 0.0
        %2042 = vmatprep.subr.mxu0 0.0
        %2043 = vmatpush1.msra.mxu0 0.0
        %2044 = vmatprep.subr.mxu0 0.0
        %2045 = vmatpush1.msra.mxu0 0.0
        %2046 = vmatprep.subr.mxu0 0.0
        %2047 = vmatpush1.msra.mxu0 0.0
        %2048 = vmatprep.subr.mxu0 0.0
        %2049 = vmatpush1.msra.mxu0 0.0
        %2050 = vmatprep.subr.mxu0 0.0
        %2051 = vmatpush1.msra.mxu0 0.0
        %2052 = vmatprep.subr.mxu0 0.0
        %2053 = vmatpush1.msra.mxu0 0.0
        %2054 = vmatprep.subr.mxu0 0.0
        %2055 = vmatpush1.msra.mxu0 0.0
        %2056 = vmatprep.subr.mxu0 0.0
        %2057 = vmatpush1.msra.mxu0 0.0
        %2058 = vmatprep.subr.mxu0 0.0
        %2059 = vmatpush1.msra.mxu0 0.0
        %2060 = vmatprep.subr.mxu0 0.0
        %2061 = vmatpush1.msra.mxu0 0.0
        %2062 = vmatprep.subr.mxu0 0.0
        %2063 = vmatpush1.msra.mxu0 0.0
        %2064 = vmatprep.subr.mxu0 0.0
        %2065 = vmatpush1.msra.mxu0 0.0
        %2066 = vmatprep.subr.mxu0 0.0
        %2067 = vmatpush1.msra.mxu0 0.0
        %2068 = vmatprep.subr.mxu0 0.0
        %2069 = vmatpush1.msra.mxu0 0.0
        %2070 = vmatprep.subr.mxu0 0.0
        %2071 = vmatpush1.msra.mxu0 0.0
        %2072 = vmatprep.mubr.f32.mxu0 0.0
        %2073 = vmatmul.mubr.f32.gmra.mrb[0].mxu0 %v2006
        %v2074 = vpop.f32.mrb[0].mxu0
        %v2075 = vadd.f32 %v2003, %v2074
        %v2076 = vpop.f32.mrb[0].mxu0
        %2077 = vdwg.mxu0
        %v2078 = vmax.f32 %v2075, 0.0
        %v2079 = vld [vmem:[%s17] sm:$0xff]
        %v2080 = vld [vmem:[%s17 + $0x8] sm:$0xff]
        %v2081 = vld [vmem:[%s17 + $0x10] sm:$0xff]
        %v2082 = vld [vmem:[%s17 + $0x18] sm:$0xff]
        %v2083 = vld [vmem:[%s17 + $0x20] sm:$0xff]
        %v2084 = vld [vmem:[%s17 + $0x28] sm:$0xff]
        %v2085 = vld [vmem:[%s17 + $0x30] sm:$0xff]
        %v2086 = vld [vmem:[%s17 + $0x38] sm:$0xff]
        %v2087 = vld [vmem:[%s17 + $0x40] sm:$0xff]
        %v2088 = vld [vmem:[%s17 + $0x48] sm:$0xff]
        %v2089 = vld [vmem:[%s17 + $0x50] sm:$0xff]
        %v2090 = vld [vmem:[%s17 + $0x58] sm:$0xff]
        %v2091 = vld [vmem:[%s17 + $0x60] sm:$0xff]
        %v2092 = vld [vmem:[%s17 + $0x68] sm:$0xff]
        %v2093 = vld [vmem:[%s17 + $0x70] sm:$0xff]
        %v2094 = vld [vmem:[%s17 + $0x78] sm:$0xff]
        %v2095 = vld [vmem:[%s18] sm:$0x1]
        %v2097 = vlaneseq
        %v2098 = vshrl.u32 %v2097, 7
        %v2099 = vsub.s32 0, %v2098
        %v2100 = vrot.slane %v2095, %v2099
        %2102 = vmatprep.subr.mxu0 0.0
        %2103 = vmatpush1.msra.mxu0 %v2079
        %2104 = vmatprep.subr.mxu0 0.0
        %2105 = vmatpush1.msra.mxu0 %v2080
        %2106 = vmatprep.subr.mxu0 0.0
        %2107 = vmatpush1.msra.mxu0 %v2081
        %2108 = vmatprep.subr.mxu0 0.0
        %2109 = vmatpush1.msra.mxu0 %v2082
        %2110 = vmatprep.subr.mxu0 0.0
        %2111 = vmatpush1.msra.mxu0 %v2083
        %2112 = vmatprep.subr.mxu0 0.0
        %2113 = vmatpush1.msra.mxu0 %v2084
        %2114 = vmatprep.subr.mxu0 0.0
        %2115 = vmatpush1.msra.mxu0 %v2085
        %2116 = vmatprep.subr.mxu0 0.0
        %2117 = vmatpush1.msra.mxu0 %v2086
        %2118 = vmatprep.subr.mxu0 0.0
        %2119 = vmatpush1.msra.mxu0 %v2087
        %2120 = vmatprep.subr.mxu0 0.0
        %2121 = vmatpush1.msra.mxu0 %v2088
        %2122 = vmatprep.subr.mxu0 0.0
        %2123 = vmatpush1.msra.mxu0 %v2089
        %2124 = vmatprep.subr.mxu0 0.0
        %2125 = vmatpush1.msra.mxu0 %v2090
        %2126 = vmatprep.subr.mxu0 0.0
        %2127 = vmatpush1.msra.mxu0 %v2091
        %2128 = vmatprep.subr.mxu0 0.0
        %2129 = vmatpush1.msra.mxu0 %v2092
        %2130 = vmatprep.subr.mxu0 0.0
        %2131 = vmatpush1.msra.mxu0 %v2093
        %2132 = vmatprep.subr.mxu0 0.0
        %2133 = vmatpush1.msra.mxu0 %v2094
        %2134 = vmatprep.subr.mxu0 0.0
        %2135 = vmatpush1.msra.mxu0 0.0
        %2136 = vmatprep.subr.mxu0 0.0
        %2137 = vmatpush1.msra.mxu0 0.0
        %2138 = vmatprep.subr.mxu0 0.0
        %2139 = vmatpush1.msra.mxu0 0.0
        %2140 = vmatprep.subr.mxu0 0.0
        %2141 = vmatpush1.msra.mxu0 0.0
        %2142 = vmatprep.subr.mxu0 0.0
        %2143 = vmatpush1.msra.mxu0 0.0
        %2144 = vmatprep.subr.mxu0 0.0
        %2145 = vmatpush1.msra.mxu0 0.0
        %2146 = vmatprep.subr.mxu0 0.0
        %2147 = vmatpush1.msra.mxu0 0.0
        %2148 = vmatprep.subr.mxu0 0.0
        %2149 = vmatpush1.msra.mxu0 0.0
        %2150 = vmatprep.subr.mxu0 0.0
        %2151 = vmatpush1.msra.mxu0 0.0
        %2152 = vmatprep.subr.mxu0 0.0
        %2153 = vmatpush1.msra.mxu0 0.0
        %2154 = vmatprep.subr.mxu0 0.0
        %2155 = vmatpush1.msra.mxu0 0.0
        %2156 = vmatprep.subr.mxu0 0.0
        %2157 = vmatpush1.msra.mxu0 0.0
        %2158 = vmatprep.subr.mxu0 0.0
        %2159 = vmatpush1.msra.mxu0 0.0
        %2160 = vmatprep.subr.mxu0 0.0
        %2161 = vmatpush1.msra.mxu0 0.0
        %2162 = vmatprep.subr.mxu0 0.0
        %2163 = vmatpush1.msra.mxu0 0.0
        %2164 = vmatprep.subr.mxu0 0.0
        %2165 = vmatpush1.msra.mxu0 0.0
        %2166 = vmatprep.mubr.f32.mxu0 0.0
        %2167 = vmatmul.mubr.f32.gmra.mrb[0].mxu0 %v2078
        %v2168 = vpop.f32.mrb[0].mxu0
        %v2169 = vadd.f32 %v2100, %v2168
        %v2170 = vpop.f32.mrb[0].mxu0
        %2171 = vdwg.mxu0
        %v2172 = vadd.f32 %v2169, %v1993
        %v2173 = vsel %vm1963, %v2172, 0.0
        %2174 = vadd.xlane.f32.xlu0 %v2173
        %v2175 = vpop.xlane.xlu0 %2174
        %v2176 = vmul.f32 %v2175, %v1967
        %v2177 = vsub.f32 %v2172, %v2176
        %v2178 = vmul.f32 %v2177, %v2177
        %v2179 = vsel %vm1963, %v2178, 0.0
        %2180 = vadd.xlane.f32.xlu0 %v2179
        %v2181 = vpop.xlane.xlu0 %2180
        %v2182 = vmul.f32 %v2181, %v1967
        %v2183 = vadd.f32 %v2182, 1e-05
        %v2184 = vrsqrt.pop %v2183
        %v2185 = vmul.f32 %v2177, %v2184
        %v2186 = vld [vmem:[%s13] sm:$0x1]
        %v2188 = vlaneseq
        %v2189 = vshrl.u32 %v2188, 7
        %v2190 = vsub.s32 0, %v2189
        %v2191 = vrot.slane %v2186, %v2190
        %v2193 = vmul.f32 %v2185, %v2191
        %v2194 = vld [vmem:[%s14] sm:$0x1]
        %v2196 = vlaneseq
        %v2197 = vshrl.u32 %v2196, 7
        %v2198 = vsub.s32 0, %v2197
        %v2199 = vrot.slane %v2194, %v2198
        %v2201 = vadd.f32 %v2193, %v2199
        %2202 = vst.msk [vmem:[%s664] sm:$0xff] %vm1963, %v2201
        %s2203 = sand.u32 %s470, 1
        %s2204 = scalar_lea.sflag [#allocation3], %s2203
        %s2205 = sand.u32 %s470, 1
        %s2206 = smul.addr %s2205, 8
        %s2207 = scalar_lea.vmem [#allocation2], %s2206
        // Predicated region
        $region97: #{tpu_custom_call.1} parent=95 // pred_check
          %p2208 = pneg %p480
        $region98: #{tpu_custom_call.1} parent=95 // pred_check_branch
          %2210 = sbr.rel (%p2208) target = $region100
        $region99: #{tpu_custom_call.1} parent=95 // pred_region
          %s2212 = ssub.s32 128, 128
          %2213 = vsyncadd %s2204, %s2212
          %s2214 = smul.addr %s33, 128
          %s2215 = scalar_lea.hbm %s19, %s2214
          %s2217 = sshll.u32 %s2207, 4
          %s2218 = int_to_ptr.vmem [resolvable:$true] %s2217
          %2220 = dma.vmem_to_hbm [thread:$0]  %s2218, 128, %s2215, %s2204
        $region100: #{tpu_custom_call.1} parent=95 // pred_fallthru
          _
      $region96: #{tpu_custom_call.1} parent=5 // pred_fallthru
        _
      %p2221 = scmp.le.s32.totalorder 2, %s28
      // Predicated region
      $region101: #{tpu_custom_call.1} parent=5 // pred_check
        %p2222 = pneg %p2221
      $region102: #{tpu_custom_call.1} parent=5 // pred_check_branch
        %2224 = sbr.rel (%p2222) target = $region104
      $region103: #{tpu_custom_call.1} parent=5 // pred_region
        %s2225 = ssub.s32 %s28, 2
        // Predicated region
        $region105: #{tpu_custom_call.1} parent=103 // pred_check
          %p2226 = pneg %p486
        $region106: #{tpu_custom_call.1} parent=103 // pred_check_branch
          %2228 = sbr.rel (%p2226) target = $region108
        $region107: #{tpu_custom_call.1} parent=103 // pred_region
          %s2229 = sand.u32 %s471, 1
          %s2230 = scalar_lea.sflag [#allocation3], %s2229
          %s2231 = sand.u32 %s471, 1
          %s2232 = smul.addr %s2231, 8
          %s2233 = scalar_lea.vmem [#allocation2], %s2232
          %2234 = dma.done %s2230, 128
        $region108: #{tpu_custom_call.1} parent=103 // pred_fallthru
          _
      $region104: #{tpu_custom_call.1} parent=5 // pred_fallthru
        _
    $region6: #{tpu_custom_call.1} parent=1 // loop_footer
      %s32 = sadd.s32 1, %s28
    $region7: #{tpu_custom_call.1} parent=1 // loop_footer_branch
      %27 = sbr.rel target = $region3
    $region8: #{tpu_custom_call.1} parent=1 // loop_exit
      _
    %2235 = vsyncpa [#allocation3], 1
    %s2236 = scalar_lea.sflag [#allocation3], 1
    %2237 = vsyncpa %s2236, 1

</llo_original>
